<compile_context>
chip_gen: v6e
topology: v6e:2x2x1
jax: 0.10.0
libtpu: 0.0.40
codegen_flags: <defaults>
</compile_context>

<pallas_src>
import functools

import jax
import jax.numpy as jnp
import numpy as np
from jax import lax
from jax.experimental import pallas as pl
from jax.experimental.pallas import tpu as pltpu


# ----------------------------------------------------------------------------
# Fused Pallas kernel: all LSTM layers + classifier head, time loop in-kernel.
# ----------------------------------------------------------------------------
def _fused_lstm_classifier_kernel(*refs, hidden_dim, n_layers):
    """Ref layout (inputs, then outputs):

      x_ref   : (S, Bp, E)          time-major embedded sequence
      h0_ref  : (L, Bp, H)          initial hidden states
      c0_ref  : (L, Bp, H)          initial cell states
      w_refs  : L x (in_dim+H, 4H)  concatenated [W_ih ; W_hh] per layer
      b_refs  : L x (1, 4H)         b_ih + b_hh per layer
      wl_ref  : (H, O)              label-layer weight
      bl_ref  : (1, O)              label-layer bias
      out_ref : (Bp, O)             sigmoid(Linear(h_last))
      hN_ref  : (L, Bp, H)          final hidden states
      cN_ref  : (L, Bp, H)          final cell states
    """
    x_ref, h0_ref, c0_ref = refs[0:3]
    w_refs = refs[3:3 + n_layers]
    b_refs = refs[3 + n_layers:3 + 2 * n_layers]
    wl_ref, bl_ref = refs[3 + 2 * n_layers:5 + 2 * n_layers]
    out_ref, hN_ref, cN_ref = refs[5 + 2 * n_layers:8 + 2 * n_layers]

    H = hidden_dim
    S = x_ref.shape[0]

    # Load weights once; they stay in vregs/VMEM for the whole recurrence.
    ws = [w_refs[l][...] for l in range(n_layers)]
    bs = [b_refs[l][...] for l in range(n_layers)]

    def step(t, carry):
        hs, cs = carry
        layer_in = x_ref[t]                                   # (Bp, E)
        new_hs, new_cs = [], []
        for l in range(n_layers):
            # Single fused matmul on [x_t ‖ h_prev] -> (Bp, 4H) gate pre-acts.
            xh = jnp.concatenate([layer_in, hs[l]], axis=-1)  # (Bp, in+H)
            gates = (jnp.dot(xh, ws[l], preferred_element_type=jnp.float32)
                     + bs[l])
            # Full-width nonlinearities (4H = 128 lanes), slice afterwards.
            sig = jax.nn.sigmoid(gates)
            tnh = jnp.tanh(gates)
            i_g = sig[:, 0 * H:1 * H]
            f_g = sig[:, 1 * H:2 * H]
            g_g = tnh[:, 2 * H:3 * H]
            o_g = sig[:, 3 * H:4 * H]

            c_new = f_g * cs[l] + i_g * g_g
            h_new = o_g * jnp.tanh(c_new)
            new_hs.append(h_new)
            new_cs.append(c_new)
            layer_in = h_new                                  # next layer input
        return tuple(new_hs), tuple(new_cs)

    h_init = tuple(h0_ref[l] for l in range(n_layers))
    c_init = tuple(c0_ref[l] for l in range(n_layers))
    hs, cs = lax.fori_loop(0, S, step, (h_init, c_init), unroll=True)

    # Classifier head on the last-timestep hidden of the last layer.
    logits = (jnp.dot(hs[-1], wl_ref[...], preferred_element_type=jnp.float32)
              + bl_ref[...])
    out_ref[...] = jax.nn.sigmoid(logits).astype(out_ref.dtype)

    for l in range(n_layers):
        hN_ref[l] = hs[l].astype(hN_ref.dtype)
        cN_ref[l] = cs[l].astype(cN_ref.dtype)


# ----------------------------------------------------------------------------
# Wrapper
# ----------------------------------------------------------------------------
def lstm_classifier_forward(params, x_ids, hidden):
    """Forward pass mirroring LSTMClassifier.forward (inference).

    x_ids  : (B, S) int32 token ids
    hidden : (h0, c0), each (n_layers, B, H)
    Returns (out (B, output_size), (h_n, c_n)).
    """
    h0_all, c0_all = hidden
    B, S = x_ids.shape
    L = len(params["lstm_layers"])
    H = h0_all.shape[-1]
    O = params["w_label"].shape[-1]

    # Embedding gather directly in time-major order: (S, B, E).
    # dropout_1 is identity at inference.
    x_tm = jnp.take(params["embedding"], x_ids.T, axis=0).astype(jnp.float32)

    # Pad batch to the sublane count (8) for full-vreg occupancy.
    Bp = max(8, -(-B // 8) * 8)
    pad = Bp - B
    if pad:
        x_tm = jnp.pad(x_tm, ((0, 0), (0, pad), (0, 0)))
        h0_all = jnp.pad(h0_all, ((0, 0), (0, pad), (0, 0)))
        c0_all = jnp.pad(c0_all, ((0, 0), (0, pad), (0, 0)))

    kernel = functools.partial(_fused_lstm_classifier_kernel,
                               hidden_dim=H, n_layers=L)

    inputs = [x_tm, h0_all, c0_all]
    inputs += [lp["w"] for lp in params["lstm_layers"]]      # (in+H, 4H)
    inputs += [lp["bias"] for lp in params["lstm_layers"]]   # (1, 4H)
    inputs += [params["w_label"], params["b_label"]]

    out, h_n, c_n = pl.pallas_call(
        kernel,
        out_shape=(
            jax.ShapeDtypeStruct((Bp, O), jnp.float32),
            jax.ShapeDtypeStruct((L, Bp, H), jnp.float32),
            jax.ShapeDtypeStruct((L, Bp, H), jnp.float32),
        ),
    )(*inputs)

    return out[:B], (h_n[:, :B], c_n[:, :B])


# ----------------------------------------------------------------------------
# Pure-JAX reference (for a correctness sanity check)
# ----------------------------------------------------------------------------
def _reference_forward(params, x_ids, hidden):
    hp = jax.lax.Precision.HIGHEST
    h0_all, c0_all = hidden
    L = len(params["lstm_layers"])
    H = h0_all.shape[-1]
    emb = jnp.take(params["embedding"], x_ids, axis=0).astype(jnp.float32)
    x_tm = jnp.transpose(emb, (1, 0, 2))
    S = x_tm.shape[0]
    hs = [h0_all[l] for l in range(L)]
    cs = [c0_all[l] for l in range(L)]
    for t in range(S):
        layer_in = x_tm[t]
        for l in range(L):
            w = params["lstm_layers"][l]["w"]
            b = params["lstm_layers"][l]["bias"]
            xh = jnp.concatenate([layer_in, hs[l]], axis=-1)
            gates = jnp.dot(xh, w, precision=hp) + b
            i_g = jax.nn.sigmoid(gates[:, 0 * H:1 * H])
            f_g = jax.nn.sigmoid(gates[:, 1 * H:2 * H])
            g_g = jnp.tanh(gates[:, 2 * H:3 * H])
            o_g = jax.nn.sigmoid(gates[:, 3 * H:4 * H])
            cs[l] = f_g * cs[l] + i_g * g_g
            hs[l] = o_g * jnp.tanh(cs[l])
            layer_in = hs[l]
    logits = jnp.dot(hs[-1], params["w_label"], precision=hp) + params["b_label"]
    return jax.nn.sigmoid(logits), (jnp.stack(hs), jnp.stack(cs))


# ----------------------------------------------------------------------------
# Deterministic parameter construction (shapes from the module's __init__)
# ----------------------------------------------------------------------------
def make_params(key, vocab_size, embedding_dim, hidden_dim, n_layers,
                output_size):
    keys = jax.random.split(key, 3 + 4 * n_layers)
    k = 1.0 / jnp.sqrt(hidden_dim)

    params = {}
    params["embedding"] = jax.random.normal(
        keys[0], (vocab_size, embedding_dim), jnp.float32)

    layers = []
    kidx = 1
    for l in range(n_layers):
        in_dim = embedding_dim if l == 0 else hidden_dim
        # NOTE: weights are stored as (in_dim, 4H) / (H, 4H), i.e. already
        # transposed relative to PyTorch's (4H, in_dim); real PyTorch
        # checkpoints must be transposed before use (and b_ih + b_hh summed).
        w_ih = jax.random.uniform(keys[kidx], (in_dim, 4 * hidden_dim),
                                  jnp.float32, -k, k); kidx += 1
        w_hh = jax.random.uniform(keys[kidx], (hidden_dim, 4 * hidden_dim),
                                  jnp.float32, -k, k); kidx += 1
        b_ih = jax.random.uniform(keys[kidx], (1, 4 * hidden_dim),
                                  jnp.float32, -k, k); kidx += 1
        b_hh = jax.random.uniform(keys[kidx], (1, 4 * hidden_dim),
                                  jnp.float32, -k, k); kidx += 1
        layers.append({
            "w": jnp.concatenate([w_ih, w_hh], axis=0),   # (in_dim + H, 4H)
            "bias": b_ih + b_hh,                          # (1, 4H)
        })
    params["lstm_layers"] = layers

    params["w_label"] = jax.random.uniform(
        keys[kidx], (hidden_dim, output_size), jnp.float32, -k, k); kidx += 1
    params["b_label"] = jax.random.uniform(
        keys[kidx], (1, output_size), jnp.float32, -k, k)
    return params


# ----------------------------------------------------------------------------
if __name__ == "__main__":
    # Small shapes consistent with the module.
    vocab_size = 50
    embedding_dim = 16
    hidden_dim = 32
    n_layers = 2
    output_size = 2
    batch = 2
    seq = 8

    key = jax.random.PRNGKey(0)
    kp, kx = jax.random.split(key)

    params = make_params(kp, vocab_size, embedding_dim, hidden_dim,
                         n_layers, output_size)

    x_ids = jax.random.randint(kx, (batch, seq), 0, vocab_size, jnp.int32)

    # init_hidden equivalent: zero h0 / c0.
    h0 = jnp.zeros((n_layers, batch, hidden_dim), jnp.float32)
    c0 = jnp.zeros((n_layers, batch, hidden_dim), jnp.float32)

    out, (h_n, c_n) = lstm_classifier_forward(params, x_ids, (h0, c0))
    jax.block_until_ready((out, h_n, c_n))

    assert out.shape == (batch, output_size)
    assert h_n.shape == (n_layers, batch, hidden_dim)
    assert c_n.shape == (n_layers, batch, hidden_dim)

    # Correctness sanity check against a pure-JAX reference.
    ref_out, (ref_h, ref_c) = _reference_forward(params, x_ids, (h0, c0))
    np.testing.assert_allclose(np.asarray(out), np.asarray(ref_out),
                               rtol=2e-3, atol=2e-3)
    np.testing.assert_allclose(np.asarray(h_n), np.asarray(ref_h),
                               rtol=2e-3, atol=2e-3)
    np.testing.assert_allclose(np.asarray(c_n), np.asarray(ref_c),
                               rtol=2e-3, atol=2e-3)

    print("KERNEL_OK")
</pallas_src>

<mosaic_0001>
module attributes {stable_mosaic.version = 11 : i64} {
  func.func @_fused_lstm_classifier_kernel(%arg0: memref<8x8x16xf32, #tpu.memory_space<vmem>>, %arg1: memref<2x8x32xf32, #tpu.memory_space<vmem>>, %arg2: memref<2x8x32xf32, #tpu.memory_space<vmem>>, %arg3: memref<48x128xf32, #tpu.memory_space<vmem>>, %arg4: memref<64x128xf32, #tpu.memory_space<vmem>>, %arg5: memref<1x128xf32, #tpu.memory_space<vmem>>, %arg6: memref<1x128xf32, #tpu.memory_space<vmem>>, %arg7: memref<32x2xf32, #tpu.memory_space<vmem>>, %arg8: memref<1x2xf32, #tpu.memory_space<vmem>>, %arg9: memref<8x2xf32, #tpu.memory_space<vmem>>, %arg10: memref<2x8x32xf32, #tpu.memory_space<vmem>>, %arg11: memref<2x8x32xf32, #tpu.memory_space<vmem>>) attributes {dimension_semantics = [], scalar_prefetch = 0 : i64, scratch_operands = 0 : i64, tpu.core_type = #tpu.core_type<tc>} {
    %c0 = arith.constant 0 : index
    %c0_0 = arith.constant 0 : index
    %0 = vector.load %arg3[%c0, %c0_0] : memref<48x128xf32, #tpu.memory_space<vmem>>, vector<48x128xf32>
    %c0_1 = arith.constant 0 : index
    %c0_2 = arith.constant 0 : index
    %1 = vector.load %arg4[%c0_1, %c0_2] : memref<64x128xf32, #tpu.memory_space<vmem>>, vector<64x128xf32>
    %c0_3 = arith.constant 0 : index
    %c0_4 = arith.constant 0 : index
    %2 = vector.load %arg5[%c0_3, %c0_4] : memref<1x128xf32, #tpu.memory_space<vmem>>, vector<1x128xf32>
    %c0_5 = arith.constant 0 : index
    %c0_6 = arith.constant 0 : index
    %3 = vector.load %arg6[%c0_5, %c0_6] : memref<1x128xf32, #tpu.memory_space<vmem>>, vector<1x128xf32>
    %c0_7 = arith.constant 0 : index
    %c0_8 = arith.constant 0 : index
    %c0_9 = arith.constant 0 : index
    %4 = vector.load %arg1[%c0_7, %c0_8, %c0_9] : memref<2x8x32xf32, #tpu.memory_space<vmem>>, vector<1x8x32xf32>
    %5 = vector.shape_cast %4 : vector<1x8x32xf32> to vector<8x32xf32>
    %c1 = arith.constant 1 : index
    %c0_10 = arith.constant 0 : index
    %c0_11 = arith.constant 0 : index
    %6 = vector.load %arg1[%c1, %c0_10, %c0_11] : memref<2x8x32xf32, #tpu.memory_space<vmem>>, vector<1x8x32xf32>
    %7 = vector.shape_cast %6 : vector<1x8x32xf32> to vector<8x32xf32>
    %c0_12 = arith.constant 0 : index
    %c0_13 = arith.constant 0 : index
    %c0_14 = arith.constant 0 : index
    %8 = vector.load %arg2[%c0_12, %c0_13, %c0_14] : memref<2x8x32xf32, #tpu.memory_space<vmem>>, vector<1x8x32xf32>
    %9 = vector.shape_cast %8 : vector<1x8x32xf32> to vector<8x32xf32>
    %c1_15 = arith.constant 1 : index
    %c0_16 = arith.constant 0 : index
    %c0_17 = arith.constant 0 : index
    %10 = vector.load %arg2[%c1_15, %c0_16, %c0_17] : memref<2x8x32xf32, #tpu.memory_space<vmem>>, vector<1x8x32xf32>
    %11 = vector.shape_cast %10 : vector<1x8x32xf32> to vector<8x32xf32>
    %c0_i32 = arith.constant 0 : i32
    %12 = arith.index_cast %c0_i32 : i32 to index
    %c0_18 = arith.constant 0 : index
    %c0_19 = arith.constant 0 : index
    %13 = vector.load %arg0[%12, %c0_18, %c0_19] : memref<8x8x16xf32, #tpu.memory_space<vmem>>, vector<1x8x16xf32>
    %14 = vector.shape_cast %13 : vector<1x8x16xf32> to vector<8x16xf32>
    %15 = tpu.concatenate %14, %5 in 1 : vector<8x16xf32>, vector<8x32xf32> -> vector<8x48xf32>
    %cst = arith.constant dense<0.000000e+00> : vector<8x128xf32>
    %16 = tpu.matmul %15, %0, %cst {dimension_numbers = #tpu.dot_dimension_numbers<[1], [0], [0], [1], [0, 0, 1, 1], [], []>} : vector<8x48xf32>, vector<48x128xf32>, vector<8x128xf32> -> vector<8x128xf32>
    %17 = vector.broadcast %2 : vector<1x128xf32> to vector<8x128xf32>
    %18 = arith.addf %16, %17 : vector<8x128xf32>
    %19 = arith.negf %18 : vector<8x128xf32>
    %20 = math.exp %19 : vector<8x128xf32>
    %cst_20 = arith.constant 1.000000e+00 : f32
    %21 = vector.broadcast %cst_20 : f32 to vector<8x128xf32>
    %22 = arith.addf %21, %20 : vector<8x128xf32>
    %23 = arith.divf %21, %22 : vector<8x128xf32>
    %24 = math.tanh %18 : vector<8x128xf32>
    %25 = vector.extract_strided_slice %23 {offsets = [0, 0], sizes = [8, 32], strides = [1, 1]} : vector<8x128xf32> to vector<8x32xf32>
    %26 = vector.extract_strided_slice %23 {offsets = [0, 32], sizes = [8, 32], strides = [1, 1]} : vector<8x128xf32> to vector<8x32xf32>
    %27 = vector.extract_strided_slice %24 {offsets = [0, 64], sizes = [8, 32], strides = [1, 1]} : vector<8x128xf32> to vector<8x32xf32>
    %28 = vector.extract_strided_slice %23 {offsets = [0, 96], sizes = [8, 32], strides = [1, 1]} : vector<8x128xf32> to vector<8x32xf32>
    %29 = arith.mulf %26, %9 : vector<8x32xf32>
    %30 = arith.mulf %25, %27 : vector<8x32xf32>
    %31 = arith.addf %29, %30 : vector<8x32xf32>
    %32 = math.tanh %31 : vector<8x32xf32>
    %33 = arith.mulf %28, %32 : vector<8x32xf32>
    %34 = tpu.concatenate %33, %7 in 1 : vector<8x32xf32>, vector<8x32xf32> -> vector<8x64xf32>
    %cst_21 = arith.constant dense<0.000000e+00> : vector<8x128xf32>
    %35 = tpu.matmul %34, %1, %cst_21 {dimension_numbers = #tpu.dot_dimension_numbers<[1], [0], [0], [1], [0, 0, 1, 1], [], []>} : vector<8x64xf32>, vector<64x128xf32>, vector<8x128xf32> -> vector<8x128xf32>
    %36 = vector.broadcast %3 : vector<1x128xf32> to vector<8x128xf32>
    %37 = arith.addf %35, %36 : vector<8x128xf32>
    %38 = arith.negf %37 : vector<8x128xf32>
    %39 = math.exp %38 : vector<8x128xf32>
    %cst_22 = arith.constant 1.000000e+00 : f32
    %40 = vector.broadcast %cst_22 : f32 to vector<8x128xf32>
    %41 = arith.addf %40, %39 : vector<8x128xf32>
    %42 = arith.divf %40, %41 : vector<8x128xf32>
    %43 = math.tanh %37 : vector<8x128xf32>
    %44 = vector.extract_strided_slice %42 {offsets = [0, 0], sizes = [8, 32], strides = [1, 1]} : vector<8x128xf32> to vector<8x32xf32>
    %45 = vector.extract_strided_slice %42 {offsets = [0, 32], sizes = [8, 32], strides = [1, 1]} : vector<8x128xf32> to vector<8x32xf32>
    %46 = vector.extract_strided_slice %43 {offsets = [0, 64], sizes = [8, 32], strides = [1, 1]} : vector<8x128xf32> to vector<8x32xf32>
    %47 = vector.extract_strided_slice %42 {offsets = [0, 96], sizes = [8, 32], strides = [1, 1]} : vector<8x128xf32> to vector<8x32xf32>
    %48 = arith.mulf %45, %11 : vector<8x32xf32>
    %49 = arith.mulf %44, %46 : vector<8x32xf32>
    %50 = arith.addf %48, %49 : vector<8x32xf32>
    %51 = math.tanh %50 : vector<8x32xf32>
    %52 = arith.mulf %47, %51 : vector<8x32xf32>
    %c1_i32 = arith.constant 1 : i32
    %53 = arith.index_cast %c1_i32 : i32 to index
    %c0_23 = arith.constant 0 : index
    %c0_24 = arith.constant 0 : index
    %54 = vector.load %arg0[%53, %c0_23, %c0_24] : memref<8x8x16xf32, #tpu.memory_space<vmem>>, vector<1x8x16xf32>
    %55 = vector.shape_cast %54 : vector<1x8x16xf32> to vector<8x16xf32>
    %56 = tpu.concatenate %55, %33 in 1 : vector<8x16xf32>, vector<8x32xf32> -> vector<8x48xf32>
    %cst_25 = arith.constant dense<0.000000e+00> : vector<8x128xf32>
    %57 = tpu.matmul %56, %0, %cst_25 {dimension_numbers = #tpu.dot_dimension_numbers<[1], [0], [0], [1], [0, 0, 1, 1], [], []>} : vector<8x48xf32>, vector<48x128xf32>, vector<8x128xf32> -> vector<8x128xf32>
    %58 = vector.broadcast %2 : vector<1x128xf32> to vector<8x128xf32>
    %59 = arith.addf %57, %58 : vector<8x128xf32>
    %60 = arith.negf %59 : vector<8x128xf32>
    %61 = math.exp %60 : vector<8x128xf32>
    %cst_26 = arith.constant 1.000000e+00 : f32
    %62 = vector.broadcast %cst_26 : f32 to vector<8x128xf32>
    %63 = arith.addf %62, %61 : vector<8x128xf32>
    %64 = arith.divf %62, %63 : vector<8x128xf32>
    %65 = math.tanh %59 : vector<8x128xf32>
    %66 = vector.extract_strided_slice %64 {offsets = [0, 0], sizes = [8, 32], strides = [1, 1]} : vector<8x128xf32> to vector<8x32xf32>
    %67 = vector.extract_strided_slice %64 {offsets = [0, 32], sizes = [8, 32], strides = [1, 1]} : vector<8x128xf32> to vector<8x32xf32>
    %68 = vector.extract_strided_slice %65 {offsets = [0, 64], sizes = [8, 32], strides = [1, 1]} : vector<8x128xf32> to vector<8x32xf32>
    %69 = vector.extract_strided_slice %64 {offsets = [0, 96], sizes = [8, 32], strides = [1, 1]} : vector<8x128xf32> to vector<8x32xf32>
    %70 = arith.mulf %67, %31 : vector<8x32xf32>
    %71 = arith.mulf %66, %68 : vector<8x32xf32>
    %72 = arith.addf %70, %71 : vector<8x32xf32>
    %73 = math.tanh %72 : vector<8x32xf32>
    %74 = arith.mulf %69, %73 : vector<8x32xf32>
    %75 = tpu.concatenate %74, %52 in 1 : vector<8x32xf32>, vector<8x32xf32> -> vector<8x64xf32>
    %cst_27 = arith.constant dense<0.000000e+00> : vector<8x128xf32>
    %76 = tpu.matmul %75, %1, %cst_27 {dimension_numbers = #tpu.dot_dimension_numbers<[1], [0], [0], [1], [0, 0, 1, 1], [], []>} : vector<8x64xf32>, vector<64x128xf32>, vector<8x128xf32> -> vector<8x128xf32>
    %77 = vector.broadcast %3 : vector<1x128xf32> to vector<8x128xf32>
    %78 = arith.addf %76, %77 : vector<8x128xf32>
    %79 = arith.negf %78 : vector<8x128xf32>
    %80 = math.exp %79 : vector<8x128xf32>
    %cst_28 = arith.constant 1.000000e+00 : f32
    %81 = vector.broadcast %cst_28 : f32 to vector<8x128xf32>
    %82 = arith.addf %81, %80 : vector<8x128xf32>
    %83 = arith.divf %81, %82 : vector<8x128xf32>
    %84 = math.tanh %78 : vector<8x128xf32>
    %85 = vector.extract_strided_slice %83 {offsets = [0, 0], sizes = [8, 32], strides = [1, 1]} : vector<8x128xf32> to vector<8x32xf32>
    %86 = vector.extract_strided_slice %83 {offsets = [0, 32], sizes = [8, 32], strides = [1, 1]} : vector<8x128xf32> to vector<8x32xf32>
    %87 = vector.extract_strided_slice %84 {offsets = [0, 64], sizes = [8, 32], strides = [1, 1]} : vector<8x128xf32> to vector<8x32xf32>
    %88 = vector.extract_strided_slice %83 {offsets = [0, 96], sizes = [8, 32], strides = [1, 1]} : vector<8x128xf32> to vector<8x32xf32>
    %89 = arith.mulf %86, %50 : vector<8x32xf32>
    %90 = arith.mulf %85, %87 : vector<8x32xf32>
    %91 = arith.addf %89, %90 : vector<8x32xf32>
    %92 = math.tanh %91 : vector<8x32xf32>
    %93 = arith.mulf %88, %92 : vector<8x32xf32>
    %c2_i32 = arith.constant 2 : i32
    %94 = arith.index_cast %c2_i32 : i32 to index
    %c0_29 = arith.constant 0 : index
    %c0_30 = arith.constant 0 : index
    %95 = vector.load %arg0[%94, %c0_29, %c0_30] : memref<8x8x16xf32, #tpu.memory_space<vmem>>, vector<1x8x16xf32>
    %96 = vector.shape_cast %95 : vector<1x8x16xf32> to vector<8x16xf32>
    %97 = tpu.concatenate %96, %74 in 1 : vector<8x16xf32>, vector<8x32xf32> -> vector<8x48xf32>
    %cst_31 = arith.constant dense<0.000000e+00> : vector<8x128xf32>
    %98 = tpu.matmul %97, %0, %cst_31 {dimension_numbers = #tpu.dot_dimension_numbers<[1], [0], [0], [1], [0, 0, 1, 1], [], []>} : vector<8x48xf32>, vector<48x128xf32>, vector<8x128xf32> -> vector<8x128xf32>
    %99 = vector.broadcast %2 : vector<1x128xf32> to vector<8x128xf32>
    %100 = arith.addf %98, %99 : vector<8x128xf32>
    %101 = arith.negf %100 : vector<8x128xf32>
    %102 = math.exp %101 : vector<8x128xf32>
    %cst_32 = arith.constant 1.000000e+00 : f32
    %103 = vector.broadcast %cst_32 : f32 to vector<8x128xf32>
    %104 = arith.addf %103, %102 : vector<8x128xf32>
    %105 = arith.divf %103, %104 : vector<8x128xf32>
    %106 = math.tanh %100 : vector<8x128xf32>
    %107 = vector.extract_strided_slice %105 {offsets = [0, 0], sizes = [8, 32], strides = [1, 1]} : vector<8x128xf32> to vector<8x32xf32>
    %108 = vector.extract_strided_slice %105 {offsets = [0, 32], sizes = [8, 32], strides = [1, 1]} : vector<8x128xf32> to vector<8x32xf32>
    %109 = vector.extract_strided_slice %106 {offsets = [0, 64], sizes = [8, 32], strides = [1, 1]} : vector<8x128xf32> to vector<8x32xf32>
    %110 = vector.extract_strided_slice %105 {offsets = [0, 96], sizes = [8, 32], strides = [1, 1]} : vector<8x128xf32> to vector<8x32xf32>
    %111 = arith.mulf %108, %72 : vector<8x32xf32>
    %112 = arith.mulf %107, %109 : vector<8x32xf32>
    %113 = arith.addf %111, %112 : vector<8x32xf32>
    %114 = math.tanh %113 : vector<8x32xf32>
    %115 = arith.mulf %110, %114 : vector<8x32xf32>
    %116 = tpu.concatenate %115, %93 in 1 : vector<8x32xf32>, vector<8x32xf32> -> vector<8x64xf32>
    %cst_33 = arith.constant dense<0.000000e+00> : vector<8x128xf32>
    %117 = tpu.matmul %116, %1, %cst_33 {dimension_numbers = #tpu.dot_dimension_numbers<[1], [0], [0], [1], [0, 0, 1, 1], [], []>} : vector<8x64xf32>, vector<64x128xf32>, vector<8x128xf32> -> vector<8x128xf32>
    %118 = vector.broadcast %3 : vector<1x128xf32> to vector<8x128xf32>
    %119 = arith.addf %117, %118 : vector<8x128xf32>
    %120 = arith.negf %119 : vector<8x128xf32>
    %121 = math.exp %120 : vector<8x128xf32>
    %cst_34 = arith.constant 1.000000e+00 : f32
    %122 = vector.broadcast %cst_34 : f32 to vector<8x128xf32>
    %123 = arith.addf %122, %121 : vector<8x128xf32>
    %124 = arith.divf %122, %123 : vector<8x128xf32>
    %125 = math.tanh %119 : vector<8x128xf32>
    %126 = vector.extract_strided_slice %124 {offsets = [0, 0], sizes = [8, 32], strides = [1, 1]} : vector<8x128xf32> to vector<8x32xf32>
    %127 = vector.extract_strided_slice %124 {offsets = [0, 32], sizes = [8, 32], strides = [1, 1]} : vector<8x128xf32> to vector<8x32xf32>
    %128 = vector.extract_strided_slice %125 {offsets = [0, 64], sizes = [8, 32], strides = [1, 1]} : vector<8x128xf32> to vector<8x32xf32>
    %129 = vector.extract_strided_slice %124 {offsets = [0, 96], sizes = [8, 32], strides = [1, 1]} : vector<8x128xf32> to vector<8x32xf32>
    %130 = arith.mulf %127, %91 : vector<8x32xf32>
    %131 = arith.mulf %126, %128 : vector<8x32xf32>
    %132 = arith.addf %130, %131 : vector<8x32xf32>
    %133 = math.tanh %132 : vector<8x32xf32>
    %134 = arith.mulf %129, %133 : vector<8x32xf32>
    %c3_i32 = arith.constant 3 : i32
    %135 = arith.index_cast %c3_i32 : i32 to index
    %c0_35 = arith.constant 0 : index
    %c0_36 = arith.constant 0 : index
    %136 = vector.load %arg0[%135, %c0_35, %c0_36] : memref<8x8x16xf32, #tpu.memory_space<vmem>>, vector<1x8x16xf32>
    %137 = vector.shape_cast %136 : vector<1x8x16xf32> to vector<8x16xf32>
    %138 = tpu.concatenate %137, %115 in 1 : vector<8x16xf32>, vector<8x32xf32> -> vector<8x48xf32>
    %cst_37 = arith.constant dense<0.000000e+00> : vector<8x128xf32>
    %139 = tpu.matmul %138, %0, %cst_37 {dimension_numbers = #tpu.dot_dimension_numbers<[1], [0], [0], [1], [0, 0, 1, 1], [], []>} : vector<8x48xf32>, vector<48x128xf32>, vector<8x128xf32> -> vector<8x128xf32>
    %140 = vector.broadcast %2 : vector<1x128xf32> to vector<8x128xf32>
    %141 = arith.addf %139, %140 : vector<8x128xf32>
    %142 = arith.negf %141 : vector<8x128xf32>
    %143 = math.exp %142 : vector<8x128xf32>
    %cst_38 = arith.constant 1.000000e+00 : f32
    %144 = vector.broadcast %cst_38 : f32 to vector<8x128xf32>
    %145 = arith.addf %144, %143 : vector<8x128xf32>
    %146 = arith.divf %144, %145 : vector<8x128xf32>
    %147 = math.tanh %141 : vector<8x128xf32>
    %148 = vector.extract_strided_slice %146 {offsets = [0, 0], sizes = [8, 32], strides = [1, 1]} : vector<8x128xf32> to vector<8x32xf32>
    %149 = vector.extract_strided_slice %146 {offsets = [0, 32], sizes = [8, 32], strides = [1, 1]} : vector<8x128xf32> to vector<8x32xf32>
    %150 = vector.extract_strided_slice %147 {offsets = [0, 64], sizes = [8, 32], strides = [1, 1]} : vector<8x128xf32> to vector<8x32xf32>
    %151 = vector.extract_strided_slice %146 {offsets = [0, 96], sizes = [8, 32], strides = [1, 1]} : vector<8x128xf32> to vector<8x32xf32>
    %152 = arith.mulf %149, %113 : vector<8x32xf32>
    %153 = arith.mulf %148, %150 : vector<8x32xf32>
    %154 = arith.addf %152, %153 : vector<8x32xf32>
    %155 = math.tanh %154 : vector<8x32xf32>
    %156 = arith.mulf %151, %155 : vector<8x32xf32>
    %157 = tpu.concatenate %156, %134 in 1 : vector<8x32xf32>, vector<8x32xf32> -> vector<8x64xf32>
    %cst_39 = arith.constant dense<0.000000e+00> : vector<8x128xf32>
    %158 = tpu.matmul %157, %1, %cst_39 {dimension_numbers = #tpu.dot_dimension_numbers<[1], [0], [0], [1], [0, 0, 1, 1], [], []>} : vector<8x64xf32>, vector<64x128xf32>, vector<8x128xf32> -> vector<8x128xf32>
    %159 = vector.broadcast %3 : vector<1x128xf32> to vector<8x128xf32>
    %160 = arith.addf %158, %159 : vector<8x128xf32>
    %161 = arith.negf %160 : vector<8x128xf32>
    %162 = math.exp %161 : vector<8x128xf32>
    %cst_40 = arith.constant 1.000000e+00 : f32
    %163 = vector.broadcast %cst_40 : f32 to vector<8x128xf32>
    %164 = arith.addf %163, %162 : vector<8x128xf32>
    %165 = arith.divf %163, %164 : vector<8x128xf32>
    %166 = math.tanh %160 : vector<8x128xf32>
    %167 = vector.extract_strided_slice %165 {offsets = [0, 0], sizes = [8, 32], strides = [1, 1]} : vector<8x128xf32> to vector<8x32xf32>
    %168 = vector.extract_strided_slice %165 {offsets = [0, 32], sizes = [8, 32], strides = [1, 1]} : vector<8x128xf32> to vector<8x32xf32>
    %169 = vector.extract_strided_slice %166 {offsets = [0, 64], sizes = [8, 32], strides = [1, 1]} : vector<8x128xf32> to vector<8x32xf32>
    %170 = vector.extract_strided_slice %165 {offsets = [0, 96], sizes = [8, 32], strides = [1, 1]} : vector<8x128xf32> to vector<8x32xf32>
    %171 = arith.mulf %168, %132 : vector<8x32xf32>
    %172 = arith.mulf %167, %169 : vector<8x32xf32>
    %173 = arith.addf %171, %172 : vector<8x32xf32>
    %174 = math.tanh %173 : vector<8x32xf32>
    %175 = arith.mulf %170, %174 : vector<8x32xf32>
    %c4_i32 = arith.constant 4 : i32
    %176 = arith.index_cast %c4_i32 : i32 to index
    %c0_41 = arith.constant 0 : index
    %c0_42 = arith.constant 0 : index
    %177 = vector.load %arg0[%176, %c0_41, %c0_42] : memref<8x8x16xf32, #tpu.memory_space<vmem>>, vector<1x8x16xf32>
    %178 = vector.shape_cast %177 : vector<1x8x16xf32> to vector<8x16xf32>
    %179 = tpu.concatenate %178, %156 in 1 : vector<8x16xf32>, vector<8x32xf32> -> vector<8x48xf32>
    %cst_43 = arith.constant dense<0.000000e+00> : vector<8x128xf32>
    %180 = tpu.matmul %179, %0, %cst_43 {dimension_numbers = #tpu.dot_dimension_numbers<[1], [0], [0], [1], [0, 0, 1, 1], [], []>} : vector<8x48xf32>, vector<48x128xf32>, vector<8x128xf32> -> vector<8x128xf32>
    %181 = vector.broadcast %2 : vector<1x128xf32> to vector<8x128xf32>
    %182 = arith.addf %180, %181 : vector<8x128xf32>
    %183 = arith.negf %182 : vector<8x128xf32>
    %184 = math.exp %183 : vector<8x128xf32>
    %cst_44 = arith.constant 1.000000e+00 : f32
    %185 = vector.broadcast %cst_44 : f32 to vector<8x128xf32>
    %186 = arith.addf %185, %184 : vector<8x128xf32>
    %187 = arith.divf %185, %186 : vector<8x128xf32>
    %188 = math.tanh %182 : vector<8x128xf32>
    %189 = vector.extract_strided_slice %187 {offsets = [0, 0], sizes = [8, 32], strides = [1, 1]} : vector<8x128xf32> to vector<8x32xf32>
    %190 = vector.extract_strided_slice %187 {offsets = [0, 32], sizes = [8, 32], strides = [1, 1]} : vector<8x128xf32> to vector<8x32xf32>
    %191 = vector.extract_strided_slice %188 {offsets = [0, 64], sizes = [8, 32], strides = [1, 1]} : vector<8x128xf32> to vector<8x32xf32>
    %192 = vector.extract_strided_slice %187 {offsets = [0, 96], sizes = [8, 32], strides = [1, 1]} : vector<8x128xf32> to vector<8x32xf32>
    %193 = arith.mulf %190, %154 : vector<8x32xf32>
    %194 = arith.mulf %189, %191 : vector<8x32xf32>
    %195 = arith.addf %193, %194 : vector<8x32xf32>
    %196 = math.tanh %195 : vector<8x32xf32>
    %197 = arith.mulf %192, %196 : vector<8x32xf32>
    %198 = tpu.concatenate %197, %175 in 1 : vector<8x32xf32>, vector<8x32xf32> -> vector<8x64xf32>
    %cst_45 = arith.constant dense<0.000000e+00> : vector<8x128xf32>
    %199 = tpu.matmul %198, %1, %cst_45 {dimension_numbers = #tpu.dot_dimension_numbers<[1], [0], [0], [1], [0, 0, 1, 1], [], []>} : vector<8x64xf32>, vector<64x128xf32>, vector<8x128xf32> -> vector<8x128xf32>
    %200 = vector.broadcast %3 : vector<1x128xf32> to vector<8x128xf32>
    %201 = arith.addf %199, %200 : vector<8x128xf32>
    %202 = arith.negf %201 : vector<8x128xf32>
    %203 = math.exp %202 : vector<8x128xf32>
    %cst_46 = arith.constant 1.000000e+00 : f32
    %204 = vector.broadcast %cst_46 : f32 to vector<8x128xf32>
    %205 = arith.addf %204, %203 : vector<8x128xf32>
    %206 = arith.divf %204, %205 : vector<8x128xf32>
    %207 = math.tanh %201 : vector<8x128xf32>
    %208 = vector.extract_strided_slice %206 {offsets = [0, 0], sizes = [8, 32], strides = [1, 1]} : vector<8x128xf32> to vector<8x32xf32>
    %209 = vector.extract_strided_slice %206 {offsets = [0, 32], sizes = [8, 32], strides = [1, 1]} : vector<8x128xf32> to vector<8x32xf32>
    %210 = vector.extract_strided_slice %207 {offsets = [0, 64], sizes = [8, 32], strides = [1, 1]} : vector<8x128xf32> to vector<8x32xf32>
    %211 = vector.extract_strided_slice %206 {offsets = [0, 96], sizes = [8, 32], strides = [1, 1]} : vector<8x128xf32> to vector<8x32xf32>
    %212 = arith.mulf %209, %173 : vector<8x32xf32>
    %213 = arith.mulf %208, %210 : vector<8x32xf32>
    %214 = arith.addf %212, %213 : vector<8x32xf32>
    %215 = math.tanh %214 : vector<8x32xf32>
    %216 = arith.mulf %211, %215 : vector<8x32xf32>
    %c5_i32 = arith.constant 5 : i32
    %217 = arith.index_cast %c5_i32 : i32 to index
    %c0_47 = arith.constant 0 : index
    %c0_48 = arith.constant 0 : index
    %218 = vector.load %arg0[%217, %c0_47, %c0_48] : memref<8x8x16xf32, #tpu.memory_space<vmem>>, vector<1x8x16xf32>
    %219 = vector.shape_cast %218 : vector<1x8x16xf32> to vector<8x16xf32>
    %220 = tpu.concatenate %219, %197 in 1 : vector<8x16xf32>, vector<8x32xf32> -> vector<8x48xf32>
    %cst_49 = arith.constant dense<0.000000e+00> : vector<8x128xf32>
    %221 = tpu.matmul %220, %0, %cst_49 {dimension_numbers = #tpu.dot_dimension_numbers<[1], [0], [0], [1], [0, 0, 1, 1], [], []>} : vector<8x48xf32>, vector<48x128xf32>, vector<8x128xf32> -> vector<8x128xf32>
    %222 = vector.broadcast %2 : vector<1x128xf32> to vector<8x128xf32>
    %223 = arith.addf %221, %222 : vector<8x128xf32>
    %224 = arith.negf %223 : vector<8x128xf32>
    %225 = math.exp %224 : vector<8x128xf32>
    %cst_50 = arith.constant 1.000000e+00 : f32
    %226 = vector.broadcast %cst_50 : f32 to vector<8x128xf32>
    %227 = arith.addf %226, %225 : vector<8x128xf32>
    %228 = arith.divf %226, %227 : vector<8x128xf32>
    %229 = math.tanh %223 : vector<8x128xf32>
    %230 = vector.extract_strided_slice %228 {offsets = [0, 0], sizes = [8, 32], strides = [1, 1]} : vector<8x128xf32> to vector<8x32xf32>
    %231 = vector.extract_strided_slice %228 {offsets = [0, 32], sizes = [8, 32], strides = [1, 1]} : vector<8x128xf32> to vector<8x32xf32>
    %232 = vector.extract_strided_slice %229 {offsets = [0, 64], sizes = [8, 32], strides = [1, 1]} : vector<8x128xf32> to vector<8x32xf32>
    %233 = vector.extract_strided_slice %228 {offsets = [0, 96], sizes = [8, 32], strides = [1, 1]} : vector<8x128xf32> to vector<8x32xf32>
    %234 = arith.mulf %231, %195 : vector<8x32xf32>
    %235 = arith.mulf %230, %232 : vector<8x32xf32>
    %236 = arith.addf %234, %235 : vector<8x32xf32>
    %237 = math.tanh %236 : vector<8x32xf32>
    %238 = arith.mulf %233, %237 : vector<8x32xf32>
    %239 = tpu.concatenate %238, %216 in 1 : vector<8x32xf32>, vector<8x32xf32> -> vector<8x64xf32>
    %cst_51 = arith.constant dense<0.000000e+00> : vector<8x128xf32>
    %240 = tpu.matmul %239, %1, %cst_51 {dimension_numbers = #tpu.dot_dimension_numbers<[1], [0], [0], [1], [0, 0, 1, 1], [], []>} : vector<8x64xf32>, vector<64x128xf32>, vector<8x128xf32> -> vector<8x128xf32>
    %241 = vector.broadcast %3 : vector<1x128xf32> to vector<8x128xf32>
    %242 = arith.addf %240, %241 : vector<8x128xf32>
    %243 = arith.negf %242 : vector<8x128xf32>
    %244 = math.exp %243 : vector<8x128xf32>
    %cst_52 = arith.constant 1.000000e+00 : f32
    %245 = vector.broadcast %cst_52 : f32 to vector<8x128xf32>
    %246 = arith.addf %245, %244 : vector<8x128xf32>
    %247 = arith.divf %245, %246 : vector<8x128xf32>
    %248 = math.tanh %242 : vector<8x128xf32>
    %249 = vector.extract_strided_slice %247 {offsets = [0, 0], sizes = [8, 32], strides = [1, 1]} : vector<8x128xf32> to vector<8x32xf32>
    %250 = vector.extract_strided_slice %247 {offsets = [0, 32], sizes = [8, 32], strides = [1, 1]} : vector<8x128xf32> to vector<8x32xf32>
    %251 = vector.extract_strided_slice %248 {offsets = [0, 64], sizes = [8, 32], strides = [1, 1]} : vector<8x128xf32> to vector<8x32xf32>
    %252 = vector.extract_strided_slice %247 {offsets = [0, 96], sizes = [8, 32], strides = [1, 1]} : vector<8x128xf32> to vector<8x32xf32>
    %253 = arith.mulf %250, %214 : vector<8x32xf32>
    %254 = arith.mulf %249, %251 : vector<8x32xf32>
    %255 = arith.addf %253, %254 : vector<8x32xf32>
    %256 = math.tanh %255 : vector<8x32xf32>
    %257 = arith.mulf %252, %256 : vector<8x32xf32>
    %c6_i32 = arith.constant 6 : i32
    %258 = arith.index_cast %c6_i32 : i32 to index
    %c0_53 = arith.constant 0 : index
    %c0_54 = arith.constant 0 : index
    %259 = vector.load %arg0[%258, %c0_53, %c0_54] : memref<8x8x16xf32, #tpu.memory_space<vmem>>, vector<1x8x16xf32>
    %260 = vector.shape_cast %259 : vector<1x8x16xf32> to vector<8x16xf32>
    %261 = tpu.concatenate %260, %238 in 1 : vector<8x16xf32>, vector<8x32xf32> -> vector<8x48xf32>
    %cst_55 = arith.constant dense<0.000000e+00> : vector<8x128xf32>
    %262 = tpu.matmul %261, %0, %cst_55 {dimension_numbers = #tpu.dot_dimension_numbers<[1], [0], [0], [1], [0, 0, 1, 1], [], []>} : vector<8x48xf32>, vector<48x128xf32>, vector<8x128xf32> -> vector<8x128xf32>
    %263 = vector.broadcast %2 : vector<1x128xf32> to vector<8x128xf32>
    %264 = arith.addf %262, %263 : vector<8x128xf32>
    %265 = arith.negf %264 : vector<8x128xf32>
    %266 = math.exp %265 : vector<8x128xf32>
    %cst_56 = arith.constant 1.000000e+00 : f32
    %267 = vector.broadcast %cst_56 : f32 to vector<8x128xf32>
    %268 = arith.addf %267, %266 : vector<8x128xf32>
    %269 = arith.divf %267, %268 : vector<8x128xf32>
    %270 = math.tanh %264 : vector<8x128xf32>
    %271 = vector.extract_strided_slice %269 {offsets = [0, 0], sizes = [8, 32], strides = [1, 1]} : vector<8x128xf32> to vector<8x32xf32>
    %272 = vector.extract_strided_slice %269 {offsets = [0, 32], sizes = [8, 32], strides = [1, 1]} : vector<8x128xf32> to vector<8x32xf32>
    %273 = vector.extract_strided_slice %270 {offsets = [0, 64], sizes = [8, 32], strides = [1, 1]} : vector<8x128xf32> to vector<8x32xf32>
    %274 = vector.extract_strided_slice %269 {offsets = [0, 96], sizes = [8, 32], strides = [1, 1]} : vector<8x128xf32> to vector<8x32xf32>
    %275 = arith.mulf %272, %236 : vector<8x32xf32>
    %276 = arith.mulf %271, %273 : vector<8x32xf32>
    %277 = arith.addf %275, %276 : vector<8x32xf32>
    %278 = math.tanh %277 : vector<8x32xf32>
    %279 = arith.mulf %274, %278 : vector<8x32xf32>
    %280 = tpu.concatenate %279, %257 in 1 : vector<8x32xf32>, vector<8x32xf32> -> vector<8x64xf32>
    %cst_57 = arith.constant dense<0.000000e+00> : vector<8x128xf32>
    %281 = tpu.matmul %280, %1, %cst_57 {dimension_numbers = #tpu.dot_dimension_numbers<[1], [0], [0], [1], [0, 0, 1, 1], [], []>} : vector<8x64xf32>, vector<64x128xf32>, vector<8x128xf32> -> vector<8x128xf32>
    %282 = vector.broadcast %3 : vector<1x128xf32> to vector<8x128xf32>
    %283 = arith.addf %281, %282 : vector<8x128xf32>
    %284 = arith.negf %283 : vector<8x128xf32>
    %285 = math.exp %284 : vector<8x128xf32>
    %cst_58 = arith.constant 1.000000e+00 : f32
    %286 = vector.broadcast %cst_58 : f32 to vector<8x128xf32>
    %287 = arith.addf %286, %285 : vector<8x128xf32>
    %288 = arith.divf %286, %287 : vector<8x128xf32>
    %289 = math.tanh %283 : vector<8x128xf32>
    %290 = vector.extract_strided_slice %288 {offsets = [0, 0], sizes = [8, 32], strides = [1, 1]} : vector<8x128xf32> to vector<8x32xf32>
    %291 = vector.extract_strided_slice %288 {offsets = [0, 32], sizes = [8, 32], strides = [1, 1]} : vector<8x128xf32> to vector<8x32xf32>
    %292 = vector.extract_strided_slice %289 {offsets = [0, 64], sizes = [8, 32], strides = [1, 1]} : vector<8x128xf32> to vector<8x32xf32>
    %293 = vector.extract_strided_slice %288 {offsets = [0, 96], sizes = [8, 32], strides = [1, 1]} : vector<8x128xf32> to vector<8x32xf32>
    %294 = arith.mulf %291, %255 : vector<8x32xf32>
    %295 = arith.mulf %290, %292 : vector<8x32xf32>
    %296 = arith.addf %294, %295 : vector<8x32xf32>
    %297 = math.tanh %296 : vector<8x32xf32>
    %298 = arith.mulf %293, %297 : vector<8x32xf32>
    %c7_i32 = arith.constant 7 : i32
    %299 = arith.index_cast %c7_i32 : i32 to index
    %c0_59 = arith.constant 0 : index
    %c0_60 = arith.constant 0 : index
    %300 = vector.load %arg0[%299, %c0_59, %c0_60] : memref<8x8x16xf32, #tpu.memory_space<vmem>>, vector<1x8x16xf32>
    %301 = vector.shape_cast %300 : vector<1x8x16xf32> to vector<8x16xf32>
    %302 = tpu.concatenate %301, %279 in 1 : vector<8x16xf32>, vector<8x32xf32> -> vector<8x48xf32>
    %cst_61 = arith.constant dense<0.000000e+00> : vector<8x128xf32>
    %303 = tpu.matmul %302, %0, %cst_61 {dimension_numbers = #tpu.dot_dimension_numbers<[1], [0], [0], [1], [0, 0, 1, 1], [], []>} : vector<8x48xf32>, vector<48x128xf32>, vector<8x128xf32> -> vector<8x128xf32>
    %304 = vector.broadcast %2 : vector<1x128xf32> to vector<8x128xf32>
    %305 = arith.addf %303, %304 : vector<8x128xf32>
    %306 = arith.negf %305 : vector<8x128xf32>
    %307 = math.exp %306 : vector<8x128xf32>
    %cst_62 = arith.constant 1.000000e+00 : f32
    %308 = vector.broadcast %cst_62 : f32 to vector<8x128xf32>
    %309 = arith.addf %308, %307 : vector<8x128xf32>
    %310 = arith.divf %308, %309 : vector<8x128xf32>
    %311 = math.tanh %305 : vector<8x128xf32>
    %312 = vector.extract_strided_slice %310 {offsets = [0, 0], sizes = [8, 32], strides = [1, 1]} : vector<8x128xf32> to vector<8x32xf32>
    %313 = vector.extract_strided_slice %310 {offsets = [0, 32], sizes = [8, 32], strides = [1, 1]} : vector<8x128xf32> to vector<8x32xf32>
    %314 = vector.extract_strided_slice %311 {offsets = [0, 64], sizes = [8, 32], strides = [1, 1]} : vector<8x128xf32> to vector<8x32xf32>
    %315 = vector.extract_strided_slice %310 {offsets = [0, 96], sizes = [8, 32], strides = [1, 1]} : vector<8x128xf32> to vector<8x32xf32>
    %316 = arith.mulf %313, %277 : vector<8x32xf32>
    %317 = arith.mulf %312, %314 : vector<8x32xf32>
    %318 = arith.addf %316, %317 : vector<8x32xf32>
    %319 = math.tanh %318 : vector<8x32xf32>
    %320 = arith.mulf %315, %319 : vector<8x32xf32>
    %321 = tpu.concatenate %320, %298 in 1 : vector<8x32xf32>, vector<8x32xf32> -> vector<8x64xf32>
    %cst_63 = arith.constant dense<0.000000e+00> : vector<8x128xf32>
    %322 = tpu.matmul %321, %1, %cst_63 {dimension_numbers = #tpu.dot_dimension_numbers<[1], [0], [0], [1], [0, 0, 1, 1], [], []>} : vector<8x64xf32>, vector<64x128xf32>, vector<8x128xf32> -> vector<8x128xf32>
    %323 = vector.broadcast %3 : vector<1x128xf32> to vector<8x128xf32>
    %324 = arith.addf %322, %323 : vector<8x128xf32>
    %325 = arith.negf %324 : vector<8x128xf32>
    %326 = math.exp %325 : vector<8x128xf32>
    %cst_64 = arith.constant 1.000000e+00 : f32
    %327 = vector.broadcast %cst_64 : f32 to vector<8x128xf32>
    %328 = arith.addf %327, %326 : vector<8x128xf32>
    %329 = arith.divf %327, %328 : vector<8x128xf32>
    %330 = math.tanh %324 : vector<8x128xf32>
    %331 = vector.extract_strided_slice %329 {offsets = [0, 0], sizes = [8, 32], strides = [1, 1]} : vector<8x128xf32> to vector<8x32xf32>
    %332 = vector.extract_strided_slice %329 {offsets = [0, 32], sizes = [8, 32], strides = [1, 1]} : vector<8x128xf32> to vector<8x32xf32>
    %333 = vector.extract_strided_slice %330 {offsets = [0, 64], sizes = [8, 32], strides = [1, 1]} : vector<8x128xf32> to vector<8x32xf32>
    %334 = vector.extract_strided_slice %329 {offsets = [0, 96], sizes = [8, 32], strides = [1, 1]} : vector<8x128xf32> to vector<8x32xf32>
    %335 = arith.mulf %332, %296 : vector<8x32xf32>
    %336 = arith.mulf %331, %333 : vector<8x32xf32>
    %337 = arith.addf %335, %336 : vector<8x32xf32>
    %338 = math.tanh %337 : vector<8x32xf32>
    %339 = arith.mulf %334, %338 : vector<8x32xf32>
    %c8_i32 = arith.constant 8 : i32
    %c0_65 = arith.constant 0 : index
    %c0_66 = arith.constant 0 : index
    %340 = vector.load %arg7[%c0_65, %c0_66] : memref<32x2xf32, #tpu.memory_space<vmem>>, vector<32x2xf32>
    %cst_67 = arith.constant dense<0.000000e+00> : vector<8x2xf32>
    %341 = tpu.matmul %339, %340, %cst_67 {dimension_numbers = #tpu.dot_dimension_numbers<[1], [0], [0], [1], [0, 0, 1, 1], [], []>} : vector<8x32xf32>, vector<32x2xf32>, vector<8x2xf32> -> vector<8x2xf32>
    %c0_68 = arith.constant 0 : index
    %c0_69 = arith.constant 0 : index
    %342 = vector.load %arg8[%c0_68, %c0_69] : memref<1x2xf32, #tpu.memory_space<vmem>>, vector<1x2xf32>
    %343 = vector.broadcast %342 : vector<1x2xf32> to vector<8x2xf32>
    %344 = arith.addf %341, %343 : vector<8x2xf32>
    %345 = arith.negf %344 : vector<8x2xf32>
    %346 = math.exp %345 : vector<8x2xf32>
    %cst_70 = arith.constant 1.000000e+00 : f32
    %347 = vector.broadcast %cst_70 : f32 to vector<8x2xf32>
    %348 = arith.addf %347, %346 : vector<8x2xf32>
    %349 = arith.divf %347, %348 : vector<8x2xf32>
    %c0_71 = arith.constant 0 : index
    %c0_72 = arith.constant 0 : index
    %350 = vector.load %arg9[%c0_71, %c0_72] : memref<8x2xf32, #tpu.memory_space<vmem>>, vector<8x2xf32>
    tpu.vector_store %arg9[%c0_71, %c0_72], %349 {strides = array<i32>} : memref<8x2xf32, #tpu.memory_space<vmem>>, vector<8x2xf32>,
    %c0_73 = arith.constant 0 : index
    %c0_74 = arith.constant 0 : index
    %c0_75 = arith.constant 0 : index
    %351 = vector.load %arg10[%c0_73, %c0_74, %c0_75] : memref<2x8x32xf32, #tpu.memory_space<vmem>>, vector<1x8x32xf32>
    %352 = vector.shape_cast %351 : vector<1x8x32xf32> to vector<8x32xf32>
    %353 = vector.shape_cast %320 : vector<8x32xf32> to vector<1x8x32xf32>
    tpu.vector_store %arg10[%c0_73, %c0_74, %c0_75], %353 {strides = array<i32>} : memref<2x8x32xf32, #tpu.memory_space<vmem>>, vector<1x8x32xf32>,
    %c0_76 = arith.constant 0 : index
    %c0_77 = arith.constant 0 : index
    %c0_78 = arith.constant 0 : index
    %354 = vector.load %arg11[%c0_76, %c0_77, %c0_78] : memref<2x8x32xf32, #tpu.memory_space<vmem>>, vector<1x8x32xf32>
    %355 = vector.shape_cast %354 : vector<1x8x32xf32> to vector<8x32xf32>
    %356 = vector.shape_cast %318 : vector<8x32xf32> to vector<1x8x32xf32>
    tpu.vector_store %arg11[%c0_76, %c0_77, %c0_78], %356 {strides = array<i32>} : memref<2x8x32xf32, #tpu.memory_space<vmem>>, vector<1x8x32xf32>,
    %c1_79 = arith.constant 1 : index
    %c0_80 = arith.constant 0 : index
    %c0_81 = arith.constant 0 : index
    %357 = vector.load %arg10[%c1_79, %c0_80, %c0_81] : memref<2x8x32xf32, #tpu.memory_space<vmem>>, vector<1x8x32xf32>
    %358 = vector.shape_cast %357 : vector<1x8x32xf32> to vector<8x32xf32>
    %359 = vector.shape_cast %339 : vector<8x32xf32> to vector<1x8x32xf32>
    tpu.vector_store %arg10[%c1_79, %c0_80, %c0_81], %359 {strides = array<i32>} : memref<2x8x32xf32, #tpu.memory_space<vmem>>, vector<1x8x32xf32>,
    %c1_82 = arith.constant 1 : index
    %c0_83 = arith.constant 0 : index
    %c0_84 = arith.constant 0 : index
    %360 = vector.load %arg11[%c1_82, %c0_83, %c0_84] : memref<2x8x32xf32, #tpu.memory_space<vmem>>, vector<1x8x32xf32>
    %361 = vector.shape_cast %360 : vector<1x8x32xf32> to vector<8x32xf32>
    %362 = vector.shape_cast %337 : vector<8x32xf32> to vector<1x8x32xf32>
    tpu.vector_store %arg11[%c1_82, %c0_83, %c0_84], %362 {strides = array<i32>} : memref<2x8x32xf32, #tpu.memory_space<vmem>>, vector<1x8x32xf32>,
    return
  }
}

</mosaic_0001>

<llo_original>
// kernel: tpu_custom_call.1
$region0: #{tpu_custom_call.1}
  #allocation0 [shape = 'u32[]', space=smem, size = 0x4, offset = 0x4, fixed_abs, tag = 'smem constant byte address 0x4 - core index']
  #allocation1 [shape = 'u32[144,128]{1,0:T(1,128)}', space=vmem, size = 0x12000, scoped, tag = 'internal scratch']
  %s0 = inlined_call_operand.hbm [shape: f32[8,8,16], index: 0, kind: input, shape index: {}]
  %s1 = inlined_call_operand.vmem [shape: f32[2,8,32], index: 1, kind: input, shape index: {}]
  %s2 = inlined_call_operand.vmem [shape: f32[2,8,32], index: 2, kind: input, shape index: {}]
  %s3 = inlined_call_operand.hbm [shape: f32[48,128], index: 3, kind: input, shape index: {}]
  %s4 = inlined_call_operand.hbm [shape: f32[64,128], index: 4, kind: input, shape index: {}]
  %s5 = inlined_call_operand.vmem [shape: f32[1,128], index: 5, kind: input, shape index: {}]
  %s6 = inlined_call_operand.vmem [shape: f32[1,128], index: 6, kind: input, shape index: {}]
  %s7 = inlined_call_operand.vmem [shape: f32[32,2], index: 7, kind: input, shape index: {}]
  %s8 = inlined_call_operand.vmem [shape: f32[1,2], index: 8, kind: input, shape index: {}]
  %s9 = inlined_call_operand.vmem [shape: f32[8,2], index: 9, kind: output, shape index: {0}]
  %s10 = inlined_call_operand.hbm [shape: f32[2,8,32], index: 10, kind: output, shape index: {1}]
  %s11 = inlined_call_operand.hbm [shape: f32[2,8,32], index: 11, kind: output, shape index: {2}]
  %12 = xla_tuple %s9, %s10, %s11
  %s13 = sld [smem:[#allocation0]]
  $region74: #{tpu_custom_call.1} parent=0
    _
  %s15 = ssub.s32 1, %s13
  %s16 = scalar_select 0, %s15, %s13
  $region1: #{tpu_custom_call.1} parent=0
    #allocation2 [shape = 'u8[32768]{0}', space=vmem, size = 0x8000, scoped, tag = 'input window, operand 0, single buffered']
    #allocation3 [shape = 's32[1]{0}', space=sflag, size = 0x4, scoped, tag = 'scoped memory for tpu_custom_call.1']
    #allocation4 [shape = 's32[1]{0}', space=sflag, size = 0x4, scoped, tag = 'scoped memory for tpu_custom_call.1']
    #allocation5 [shape = 'u8[24576]{0}', space=vmem, size = 0x6000, scoped, tag = 'input window, operand 3, single buffered']
    #allocation6 [shape = 's32[1]{0}', space=sflag, size = 0x4, scoped, tag = 'scoped memory for tpu_custom_call.1']
    #allocation7 [shape = 'u8[32768]{0}', space=vmem, size = 0x8000, scoped, tag = 'input window, operand 4, single buffered']
    #allocation8 [shape = 'u8[8192]{0}', space=vmem, size = 0x2000, scoped, tag = 'output window, operand 1, single buffered']
    #allocation9 [shape = 'u8[8192]{0}', space=vmem, size = 0x2000, scoped, tag = 'output window, operand 2, single buffered']
    #allocation10 [shape = 's32[1]{0}', space=sflag, size = 0x4, scoped, tag = 'scoped memory for tpu_custom_call.1']
    %17 = vsyncpa [#allocation3], 0
    %18 = vsyncpa [#allocation6], 0
    %19 = vsyncpa [#allocation4], 0
    %20 = vsyncpa [#allocation10], 0
    // Predicated region
    $region2: #{tpu_custom_call.1} parent=1 // pred_check
      _
    $region3: #{tpu_custom_call.1} parent=1 // pred_check_branch
      %22 = sbr.rel (0) target = $region5
    $region4: #{tpu_custom_call.1} parent=1 // pred_region
      %s24 = ssub.s32 1024, 1024
      %25 = vsyncadd [#allocation3], %s24
      %s26 = sshll.u32 [#allocation2], 4
      %s27 = int_to_ptr.vmem [resolvable:$true] %s26
      %32 = dma.hbm_to_vmem [thread:$0]  %s0, 1024, %s27, [#allocation3], 128, 128, 8
    $region5: #{tpu_custom_call.1} parent=1 // pred_fallthru
      _
    // Predicated region
    $region6: #{tpu_custom_call.1} parent=1 // pred_check
      _
    $region7: #{tpu_custom_call.1} parent=1 // pred_check_branch
      %34 = sbr.rel (0) target = $region9
    $region8: #{tpu_custom_call.1} parent=1 // pred_region
      _
    $region9: #{tpu_custom_call.1} parent=1 // pred_fallthru
      _
    // Predicated region
    $region10: #{tpu_custom_call.1} parent=1 // pred_check
      _
    $region11: #{tpu_custom_call.1} parent=1 // pred_check_branch
      %36 = sbr.rel (0) target = $region13
    $region12: #{tpu_custom_call.1} parent=1 // pred_region
      _
    $region13: #{tpu_custom_call.1} parent=1 // pred_fallthru
      _
    // Predicated region
    $region14: #{tpu_custom_call.1} parent=1 // pred_check
      _
    $region15: #{tpu_custom_call.1} parent=1 // pred_check_branch
      %38 = sbr.rel (0) target = $region17
    $region16: #{tpu_custom_call.1} parent=1 // pred_region
      %s40 = ssub.s32 768, 768
      %41 = vsyncadd [#allocation6], %s40
      %s42 = sshll.u32 [#allocation5], 4
      %s43 = int_to_ptr.vmem [resolvable:$true] %s42
      %48 = dma.hbm_to_vmem [thread:$0]  %s3, 768, %s43, [#allocation6], 128, 128, 8
    $region17: #{tpu_custom_call.1} parent=1 // pred_fallthru
      _
    // Predicated region
    $region18: #{tpu_custom_call.1} parent=1 // pred_check
      _
    $region19: #{tpu_custom_call.1} parent=1 // pred_check_branch
      %50 = sbr.rel (0) target = $region21
    $region20: #{tpu_custom_call.1} parent=1 // pred_region
      %s52 = ssub.s32 1024, 1024
      %53 = vsyncadd [#allocation6], %s52
      %s54 = sshll.u32 [#allocation7], 4
      %s55 = int_to_ptr.vmem [resolvable:$true] %s54
      %60 = dma.hbm_to_vmem [thread:$0]  %s4, 1024, %s55, [#allocation6], 128, 128, 8
    $region21: #{tpu_custom_call.1} parent=1 // pred_fallthru
      _
    // Predicated region
    $region22: #{tpu_custom_call.1} parent=1 // pred_check
      _
    $region23: #{tpu_custom_call.1} parent=1 // pred_check_branch
      %62 = sbr.rel (0) target = $region25
    $region24: #{tpu_custom_call.1} parent=1 // pred_region
      _
    $region25: #{tpu_custom_call.1} parent=1 // pred_fallthru
      _
    // Predicated region
    $region26: #{tpu_custom_call.1} parent=1 // pred_check
      _
    $region27: #{tpu_custom_call.1} parent=1 // pred_check_branch
      %64 = sbr.rel (0) target = $region29
    $region28: #{tpu_custom_call.1} parent=1 // pred_region
      _
    $region29: #{tpu_custom_call.1} parent=1 // pred_fallthru
      _
    // Predicated region
    $region30: #{tpu_custom_call.1} parent=1 // pred_check
      _
    $region31: #{tpu_custom_call.1} parent=1 // pred_check_branch
      %66 = sbr.rel (0) target = $region33
    $region32: #{tpu_custom_call.1} parent=1 // pred_region
      _
    $region33: #{tpu_custom_call.1} parent=1 // pred_fallthru
      _
    // Predicated region
    $region34: #{tpu_custom_call.1} parent=1 // pred_check
      _
    $region35: #{tpu_custom_call.1} parent=1 // pred_check_branch
      %68 = sbr.rel (0) target = $region37
    $region36: #{tpu_custom_call.1} parent=1 // pred_region
      _
    $region37: #{tpu_custom_call.1} parent=1 // pred_fallthru
      _
    // Predicated region
    $region38: #{tpu_custom_call.1} parent=1 // pred_check
      _
    $region39: #{tpu_custom_call.1} parent=1 // pred_check_branch
      %70 = sbr.rel (0) target = $region41
    $region40: #{tpu_custom_call.1} parent=1 // pred_region
      %71 = dma.done [#allocation3], 1024
    $region41: #{tpu_custom_call.1} parent=1 // pred_fallthru
      _
    // Predicated region
    $region42: #{tpu_custom_call.1} parent=1 // pred_check
      _
    $region43: #{tpu_custom_call.1} parent=1 // pred_check_branch
      %73 = sbr.rel (0) target = $region45
    $region44: #{tpu_custom_call.1} parent=1 // pred_region
      %74 = dma.done [#allocation6], 768
    $region45: #{tpu_custom_call.1} parent=1 // pred_fallthru
      _
    // Predicated region
    $region46: #{tpu_custom_call.1} parent=1 // pred_check
      _
    $region47: #{tpu_custom_call.1} parent=1 // pred_check_branch
      %76 = sbr.rel (0) target = $region49
    $region48: #{tpu_custom_call.1} parent=1 // pred_region
      %77 = dma.done [#allocation6], 1024
    $region49: #{tpu_custom_call.1} parent=1 // pred_fallthru
      _
    %v78 = vld [vmem:[#allocation5] sm:$0xff]
    %v79 = vld [vmem:[#allocation5 + $0x8] sm:$0xff]
    %v80 = vld [vmem:[#allocation5 + $0x10] sm:$0xff]
    %v81 = vld [vmem:[#allocation5 + $0x18] sm:$0xff]
    %v82 = vld [vmem:[#allocation5 + $0x20] sm:$0xff]
    %v83 = vld [vmem:[#allocation5 + $0x28] sm:$0xff]
    %v84 = vld [vmem:[#allocation7] sm:$0xff]
    %v85 = vld [vmem:[#allocation7 + $0x8] sm:$0xff]
    %v86 = vld [vmem:[#allocation7 + $0x10] sm:$0xff]
    %v87 = vld [vmem:[#allocation7 + $0x18] sm:$0xff]
    %v88 = vld [vmem:[#allocation7 + $0x20] sm:$0xff]
    %v89 = vld [vmem:[#allocation7 + $0x28] sm:$0xff]
    %v90 = vld [vmem:[#allocation7 + $0x30] sm:$0xff]
    %v91 = vld [vmem:[#allocation7 + $0x38] sm:$0xff]
    %v92 = vld [vmem:[%s5] sm:$0x1]
    %v93 = vld [vmem:[%s6] sm:$0x1]
    %v94 = vld [vmem:[%s1] sm:$0xff]
    %s95 = scalar_lea.vmem %s1, 8
    %v96 = vld [vmem:[%s95] sm:$0xff]
    %v97 = vld [vmem:[%s2] sm:$0xff]
    %s98 = scalar_lea.vmem %s2, 8
    %v99 = vld [vmem:[%s98] sm:$0xff]
    %v100 = vld [vmem:[#allocation2] sm:$0xff]
    %102 = vrot.lane.b32.xlu0 %v94, 16
    %v103 = vpop.permute.xlu0 %102
    %vm105 = vcmask 130048
    %v106 = vsel %vm105, %v100, %v103
    %v108 = vlaneseq
    %v109 = vshrl.u32 %v108, 7
    %v110 = vsub.s32 0, %v109
    %v111 = vrot.slane %v92, %v110
    %vm113 = vcmask 392192
    %v115 = vsel %vm113, %v106, 0
    %117 = vmatprep.subr.mxu0 0.0
    %118 = vmatpush1.msra.mxu0 0.0
    %119 = vmatprep.subr.mxu0 0.0
    %120 = vmatpush1.msra.mxu0 0.0
    %121 = vmatprep.subr.mxu0 0.0
    %122 = vmatpush1.msra.mxu0 0.0
    %123 = vmatprep.subr.mxu0 0.0
    %124 = vmatpush1.msra.mxu0 0.0
    %125 = vmatprep.subr.mxu0 0.0
    %126 = vmatpush1.msra.mxu0 0.0
    %127 = vmatprep.subr.mxu0 0.0
    %128 = vmatpush1.msra.mxu0 0.0
    %129 = vmatprep.subr.mxu0 0.0
    %130 = vmatpush1.msra.mxu0 0.0
    %131 = vmatprep.subr.mxu0 0.0
    %132 = vmatpush1.msra.mxu0 0.0
    %133 = vmatprep.subr.mxu0 0.0
    %134 = vmatpush1.msra.mxu0 0.0
    %135 = vmatprep.subr.mxu0 0.0
    %136 = vmatpush1.msra.mxu0 0.0
    %137 = vmatprep.subr.mxu0 0.0
    %138 = vmatpush1.msra.mxu0 %v83
    %139 = vmatprep.subr.mxu0 0.0
    %140 = vmatpush1.msra.mxu0 %v82
    %141 = vmatprep.subr.mxu0 0.0
    %142 = vmatpush1.msra.mxu0 %v81
    %143 = vmatprep.subr.mxu0 0.0
    %144 = vmatpush1.msra.mxu0 %v80
    %145 = vmatprep.subr.mxu0 0.0
    %146 = vmatpush1.msra.mxu0 %v79
    %147 = vmatprep.subr.mxu0 0.0
    %148 = vmatpush1.msra.mxu0 %v78
    %149 = vmatprep.subr.mxu0 0.0
    %150 = vmatpush2.msra.mxu0 0.0
    %151 = vmatprep.subr.mxu0 0.0
    %152 = vmatpush2.msra.mxu0 0.0
    %153 = vmatprep.subr.mxu0 0.0
    %154 = vmatpush2.msra.mxu0 0.0
    %155 = vmatprep.subr.mxu0 0.0
    %156 = vmatpush2.msra.mxu0 0.0
    %157 = vmatprep.subr.mxu0 0.0
    %158 = vmatpush2.msra.mxu0 0.0
    %159 = vmatprep.subr.mxu0 0.0
    %160 = vmatpush2.msra.mxu0 0.0
    %161 = vmatprep.subr.mxu0 0.0
    %162 = vmatpush2.msra.mxu0 0.0
    %163 = vmatprep.subr.mxu0 0.0
    %164 = vmatpush2.msra.mxu0 0.0
    %165 = vmatprep.subr.mxu0 0.0
    %166 = vmatpush2.msra.mxu0 0.0
    %167 = vmatprep.subr.mxu0 0.0
    %168 = vmatpush2.msra.mxu0 0.0
    %169 = vmatprep.subr.mxu0 0.0
    %170 = vmatpush2.msra.mxu0 0.0
    %171 = vmatprep.subr.mxu0 0.0
    %172 = vmatpush2.msra.mxu0 0.0
    %173 = vmatprep.subr.mxu0 0.0
    %174 = vmatpush2.msra.mxu0 0.0
    %175 = vmatprep.subr.mxu0 0.0
    %176 = vmatpush2.msra.mxu0 0.0
    %177 = vmatprep.subr.mxu0 0.0
    %178 = vmatpush2.msra.mxu0 0.0
    %179 = vmatprep.subr.mxu0 0.0
    %180 = vmatpush2.msra.mxu0 0.0
    %181 = vmatprep.mubr.f32.mxu0 0.0
    %182 = vmatmul.mubr.f32.gmra.mxu0 %v115
    %v183 = vpop.f32.mrf.mxu0
    %v184 = vadd.f32 %v111, %v183
    %v185 = vpop.f32.mrf.mxu0
    %186 = vdwg.mxu0
    %v187 = vxor.u32 %v184, 2147483648
    %v188 = vmul.f32 %v187, 1.442695
    %v189 = vpow.pop %v188
    %v190 = vadd.f32 %v189, 1.0
    %v191 = vrcp.pop %v190
    %v192 = vmul.f32 1.0, %v191
    %v193 = vtanh.pop %v184
    %195 = vrot.lane.b32.xlu0 %v97, 32
    %v196 = vpop.permute.xlu0 %195
    %v198 = vmul.f32 %v192, %v196
    %200 = vrot.lane.b32.xlu0 %v193, 64
    %v201 = vpop.permute.xlu0 %200
    %v203 = vmul.f32 %v192, %v201
    %205 = vrot.lane.b32.xlu0 %v203, 32
    %v206 = vpop.permute.xlu0 %205
    %v208 = vadd.f32 %v198, %v206
    %v209 = vtanh.pop %v208
    %211 = vrot.lane.b32.xlu0 %v209, 64
    %v212 = vpop.permute.xlu0 %211
    %v214 = vmul.f32 %v192, %v212
    %216 = vrot.lane.b32.xlu0 %v214, 32
    %v217 = vpop.permute.xlu0 %216
    %220 = vrot.lane.b32.xlu0 %v96, 32
    %v221 = vpop.permute.xlu0 %220
    %vm223 = vcmask 261120
    %v224 = vsel %vm223, %v217, %v221
    %v226 = vlaneseq
    %v227 = vshrl.u32 %v226, 7
    %v228 = vsub.s32 0, %v227
    %v229 = vrot.slane %v93, %v228
    %vm231 = vcmask 523264
    %v233 = vsel %vm231, %v224, 0
    %235 = vmatprep.subr.mxu0 0.0
    %236 = vmatpush1.msra.mxu0 0.0
    %237 = vmatprep.subr.mxu0 0.0
    %238 = vmatpush1.msra.mxu0 0.0
    %239 = vmatprep.subr.mxu0 0.0
    %240 = vmatpush1.msra.mxu0 0.0
    %241 = vmatprep.subr.mxu0 0.0
    %242 = vmatpush1.msra.mxu0 0.0
    %243 = vmatprep.subr.mxu0 0.0
    %244 = vmatpush1.msra.mxu0 0.0
    %245 = vmatprep.subr.mxu0 0.0
    %246 = vmatpush1.msra.mxu0 0.0
    %247 = vmatprep.subr.mxu0 0.0
    %248 = vmatpush1.msra.mxu0 0.0
    %249 = vmatprep.subr.mxu0 0.0
    %250 = vmatpush1.msra.mxu0 0.0
    %251 = vmatprep.subr.mxu0 0.0
    %252 = vmatpush1.msra.mxu0 %v91
    %253 = vmatprep.subr.mxu0 0.0
    %254 = vmatpush1.msra.mxu0 %v90
    %255 = vmatprep.subr.mxu0 0.0
    %256 = vmatpush1.msra.mxu0 %v89
    %257 = vmatprep.subr.mxu0 0.0
    %258 = vmatpush1.msra.mxu0 %v88
    %259 = vmatprep.subr.mxu0 0.0
    %260 = vmatpush1.msra.mxu0 %v87
    %261 = vmatprep.subr.mxu0 0.0
    %262 = vmatpush1.msra.mxu0 %v86
    %263 = vmatprep.subr.mxu0 0.0
    %264 = vmatpush1.msra.mxu0 %v85
    %265 = vmatprep.subr.mxu0 0.0
    %266 = vmatpush1.msra.mxu0 %v84
    %267 = vmatprep.subr.mxu0 0.0
    %268 = vmatpush2.msra.mxu0 0.0
    %269 = vmatprep.subr.mxu0 0.0
    %270 = vmatpush2.msra.mxu0 0.0
    %271 = vmatprep.subr.mxu0 0.0
    %272 = vmatpush2.msra.mxu0 0.0
    %273 = vmatprep.subr.mxu0 0.0
    %274 = vmatpush2.msra.mxu0 0.0
    %275 = vmatprep.subr.mxu0 0.0
    %276 = vmatpush2.msra.mxu0 0.0
    %277 = vmatprep.subr.mxu0 0.0
    %278 = vmatpush2.msra.mxu0 0.0
    %279 = vmatprep.subr.mxu0 0.0
    %280 = vmatpush2.msra.mxu0 0.0
    %281 = vmatprep.subr.mxu0 0.0
    %282 = vmatpush2.msra.mxu0 0.0
    %283 = vmatprep.subr.mxu0 0.0
    %284 = vmatpush2.msra.mxu0 0.0
    %285 = vmatprep.subr.mxu0 0.0
    %286 = vmatpush2.msra.mxu0 0.0
    %287 = vmatprep.subr.mxu0 0.0
    %288 = vmatpush2.msra.mxu0 0.0
    %289 = vmatprep.subr.mxu0 0.0
    %290 = vmatpush2.msra.mxu0 0.0
    %291 = vmatprep.subr.mxu0 0.0
    %292 = vmatpush2.msra.mxu0 0.0
    %293 = vmatprep.subr.mxu0 0.0
    %294 = vmatpush2.msra.mxu0 0.0
    %295 = vmatprep.subr.mxu0 0.0
    %296 = vmatpush2.msra.mxu0 0.0
    %297 = vmatprep.subr.mxu0 0.0
    %298 = vmatpush2.msra.mxu0 0.0
    %299 = vmatprep.mubr.f32.mxu0 0.0
    %300 = vmatmul.mubr.f32.gmra.mxu0 %v233
    %v301 = vpop.f32.mrf.mxu0
    %v302 = vadd.f32 %v229, %v301
    %v303 = vpop.f32.mrf.mxu0
    %304 = vdwg.mxu0
    %v305 = vxor.u32 %v302, 2147483648
    %v306 = vmul.f32 %v305, 1.442695
    %v307 = vpow.pop %v306
    %v308 = vadd.f32 %v307, 1.0
    %v309 = vrcp.pop %v308
    %v310 = vmul.f32 1.0, %v309
    %v311 = vtanh.pop %v302
    %313 = vrot.lane.b32.xlu0 %v99, 32
    %v314 = vpop.permute.xlu0 %313
    %v316 = vmul.f32 %v310, %v314
    %318 = vrot.lane.b32.xlu0 %v311, 64
    %v319 = vpop.permute.xlu0 %318
    %v321 = vmul.f32 %v310, %v319
    %323 = vrot.lane.b32.xlu0 %v321, 32
    %v324 = vpop.permute.xlu0 %323
    %v326 = vadd.f32 %v316, %v324
    %v327 = vtanh.pop %v326
    %329 = vrot.lane.b32.xlu0 %v327, 64
    %v330 = vpop.permute.xlu0 %329
    %v332 = vmul.f32 %v310, %v330
    %s333 = scalar_lea.vmem [#allocation2], 8
    %v334 = vld [vmem:[%s333] sm:$0xff]
    %335 = vrot.lane.b32.xlu0 %v214, 48
    %v336 = vpop.permute.xlu0 %335
    %v338 = vsel %vm105, %v334, %v336
    %v340 = vsel %vm113, %v338, 0
    %342 = vmatprep.subr.mxu0 0.0
    %343 = vmatpush1.msra.mxu0 0.0
    %344 = vmatprep.subr.mxu0 0.0
    %345 = vmatpush1.msra.mxu0 0.0
    %346 = vmatprep.subr.mxu0 0.0
    %347 = vmatpush1.msra.mxu0 0.0
    %348 = vmatprep.subr.mxu0 0.0
    %349 = vmatpush1.msra.mxu0 0.0
    %350 = vmatprep.subr.mxu0 0.0
    %351 = vmatpush1.msra.mxu0 0.0
    %352 = vmatprep.subr.mxu0 0.0
    %353 = vmatpush1.msra.mxu0 0.0
    %354 = vmatprep.subr.mxu0 0.0
    %355 = vmatpush1.msra.mxu0 0.0
    %356 = vmatprep.subr.mxu0 0.0
    %357 = vmatpush1.msra.mxu0 0.0
    %358 = vmatprep.subr.mxu0 0.0
    %359 = vmatpush1.msra.mxu0 0.0
    %360 = vmatprep.subr.mxu0 0.0
    %361 = vmatpush1.msra.mxu0 0.0
    %362 = vmatprep.subr.mxu0 0.0
    %363 = vmatpush1.msra.mxu0 %v83
    %364 = vmatprep.subr.mxu0 0.0
    %365 = vmatpush1.msra.mxu0 %v82
    %366 = vmatprep.subr.mxu0 0.0
    %367 = vmatpush1.msra.mxu0 %v81
    %368 = vmatprep.subr.mxu0 0.0
    %369 = vmatpush1.msra.mxu0 %v80
    %370 = vmatprep.subr.mxu0 0.0
    %371 = vmatpush1.msra.mxu0 %v79
    %372 = vmatprep.subr.mxu0 0.0
    %373 = vmatpush1.msra.mxu0 %v78
    %374 = vmatprep.subr.mxu0 0.0
    %375 = vmatpush2.msra.mxu0 0.0
    %376 = vmatprep.subr.mxu0 0.0
    %377 = vmatpush2.msra.mxu0 0.0
    %378 = vmatprep.subr.mxu0 0.0
    %379 = vmatpush2.msra.mxu0 0.0
    %380 = vmatprep.subr.mxu0 0.0
    %381 = vmatpush2.msra.mxu0 0.0
    %382 = vmatprep.subr.mxu0 0.0
    %383 = vmatpush2.msra.mxu0 0.0
    %384 = vmatprep.subr.mxu0 0.0
    %385 = vmatpush2.msra.mxu0 0.0
    %386 = vmatprep.subr.mxu0 0.0
    %387 = vmatpush2.msra.mxu0 0.0
    %388 = vmatprep.subr.mxu0 0.0
    %389 = vmatpush2.msra.mxu0 0.0
    %390 = vmatprep.subr.mxu0 0.0
    %391 = vmatpush2.msra.mxu0 0.0
    %392 = vmatprep.subr.mxu0 0.0
    %393 = vmatpush2.msra.mxu0 0.0
    %394 = vmatprep.subr.mxu0 0.0
    %395 = vmatpush2.msra.mxu0 0.0
    %396 = vmatprep.subr.mxu0 0.0
    %397 = vmatpush2.msra.mxu0 0.0
    %398 = vmatprep.subr.mxu0 0.0
    %399 = vmatpush2.msra.mxu0 0.0
    %400 = vmatprep.subr.mxu0 0.0
    %401 = vmatpush2.msra.mxu0 0.0
    %402 = vmatprep.subr.mxu0 0.0
    %403 = vmatpush2.msra.mxu0 0.0
    %404 = vmatprep.subr.mxu0 0.0
    %405 = vmatpush2.msra.mxu0 0.0
    %406 = vmatprep.mubr.f32.mxu0 0.0
    %407 = vmatmul.mubr.f32.gmra.mxu0 %v340
    %v408 = vpop.f32.mrf.mxu0
    %v409 = vadd.f32 %v111, %v408
    %v410 = vpop.f32.mrf.mxu0
    %411 = vdwg.mxu0
    %v412 = vxor.u32 %v409, 2147483648
    %v413 = vmul.f32 %v412, 1.442695
    %v414 = vpow.pop %v413
    %v415 = vadd.f32 %v414, 1.0
    %v416 = vrcp.pop %v415
    %v417 = vmul.f32 1.0, %v416
    %v418 = vtanh.pop %v409
    %v419 = vmul.f32 %v417, %v208
    %421 = vrot.lane.b32.xlu0 %v418, 64
    %v422 = vpop.permute.xlu0 %421
    %v424 = vmul.f32 %v417, %v422
    %426 = vrot.lane.b32.xlu0 %v424, 32
    %v427 = vpop.permute.xlu0 %426
    %v429 = vadd.f32 %v419, %v427
    %v430 = vtanh.pop %v429
    %432 = vrot.lane.b32.xlu0 %v430, 64
    %v433 = vpop.permute.xlu0 %432
    %v435 = vmul.f32 %v417, %v433
    %437 = vrot.lane.b32.xlu0 %v435, 32
    %v438 = vpop.permute.xlu0 %437
    %441 = vrot.lane.b32.xlu0 %v332, 64
    %v442 = vpop.permute.xlu0 %441
    %v444 = vsel %vm223, %v438, %v442
    %v446 = vsel %vm231, %v444, 0
    %448 = vmatprep.subr.mxu0 0.0
    %449 = vmatpush1.msra.mxu0 0.0
    %450 = vmatprep.subr.mxu0 0.0
    %451 = vmatpush1.msra.mxu0 0.0
    %452 = vmatprep.subr.mxu0 0.0
    %453 = vmatpush1.msra.mxu0 0.0
    %454 = vmatprep.subr.mxu0 0.0
    %455 = vmatpush1.msra.mxu0 0.0
    %456 = vmatprep.subr.mxu0 0.0
    %457 = vmatpush1.msra.mxu0 0.0
    %458 = vmatprep.subr.mxu0 0.0
    %459 = vmatpush1.msra.mxu0 0.0
    %460 = vmatprep.subr.mxu0 0.0
    %461 = vmatpush1.msra.mxu0 0.0
    %462 = vmatprep.subr.mxu0 0.0
    %463 = vmatpush1.msra.mxu0 0.0
    %464 = vmatprep.subr.mxu0 0.0
    %465 = vmatpush1.msra.mxu0 %v91
    %466 = vmatprep.subr.mxu0 0.0
    %467 = vmatpush1.msra.mxu0 %v90
    %468 = vmatprep.subr.mxu0 0.0
    %469 = vmatpush1.msra.mxu0 %v89
    %470 = vmatprep.subr.mxu0 0.0
    %471 = vmatpush1.msra.mxu0 %v88
    %472 = vmatprep.subr.mxu0 0.0
    %473 = vmatpush1.msra.mxu0 %v87
    %474 = vmatprep.subr.mxu0 0.0
    %475 = vmatpush1.msra.mxu0 %v86
    %476 = vmatprep.subr.mxu0 0.0
    %477 = vmatpush1.msra.mxu0 %v85
    %478 = vmatprep.subr.mxu0 0.0
    %479 = vmatpush1.msra.mxu0 %v84
    %480 = vmatprep.subr.mxu0 0.0
    %481 = vmatpush2.msra.mxu0 0.0
    %482 = vmatprep.subr.mxu0 0.0
    %483 = vmatpush2.msra.mxu0 0.0
    %484 = vmatprep.subr.mxu0 0.0
    %485 = vmatpush2.msra.mxu0 0.0
    %486 = vmatprep.subr.mxu0 0.0
    %487 = vmatpush2.msra.mxu0 0.0
    %488 = vmatprep.subr.mxu0 0.0
    %489 = vmatpush2.msra.mxu0 0.0
    %490 = vmatprep.subr.mxu0 0.0
    %491 = vmatpush2.msra.mxu0 0.0
    %492 = vmatprep.subr.mxu0 0.0
    %493 = vmatpush2.msra.mxu0 0.0
    %494 = vmatprep.subr.mxu0 0.0
    %495 = vmatpush2.msra.mxu0 0.0
    %496 = vmatprep.subr.mxu0 0.0
    %497 = vmatpush2.msra.mxu0 0.0
    %498 = vmatprep.subr.mxu0 0.0
    %499 = vmatpush2.msra.mxu0 0.0
    %500 = vmatprep.subr.mxu0 0.0
    %501 = vmatpush2.msra.mxu0 0.0
    %502 = vmatprep.subr.mxu0 0.0
    %503 = vmatpush2.msra.mxu0 0.0
    %504 = vmatprep.subr.mxu0 0.0
    %505 = vmatpush2.msra.mxu0 0.0
    %506 = vmatprep.subr.mxu0 0.0
    %507 = vmatpush2.msra.mxu0 0.0
    %508 = vmatprep.subr.mxu0 0.0
    %509 = vmatpush2.msra.mxu0 0.0
    %510 = vmatprep.subr.mxu0 0.0
    %511 = vmatpush2.msra.mxu0 0.0
    %512 = vmatprep.mubr.f32.mxu0 0.0
    %513 = vmatmul.mubr.f32.gmra.mxu0 %v446
    %v514 = vpop.f32.mrf.mxu0
    %v515 = vadd.f32 %v229, %v514
    %v516 = vpop.f32.mrf.mxu0
    %517 = vdwg.mxu0
    %v518 = vxor.u32 %v515, 2147483648
    %v519 = vmul.f32 %v518, 1.442695
    %v520 = vpow.pop %v519
    %v521 = vadd.f32 %v520, 1.0
    %v522 = vrcp.pop %v521
    %v523 = vmul.f32 1.0, %v522
    %v524 = vtanh.pop %v515
    %v525 = vmul.f32 %v523, %v326
    %527 = vrot.lane.b32.xlu0 %v524, 64
    %v528 = vpop.permute.xlu0 %527
    %v530 = vmul.f32 %v523, %v528
    %532 = vrot.lane.b32.xlu0 %v530, 32
    %v533 = vpop.permute.xlu0 %532
    %v535 = vadd.f32 %v525, %v533
    %v536 = vtanh.pop %v535
    %538 = vrot.lane.b32.xlu0 %v536, 64
    %v539 = vpop.permute.xlu0 %538
    %v541 = vmul.f32 %v523, %v539
    %s542 = scalar_lea.vmem [#allocation2], 16
    %v543 = vld [vmem:[%s542] sm:$0xff]
    %544 = vrot.lane.b32.xlu0 %v435, 48
    %v545 = vpop.permute.xlu0 %544
    %v547 = vsel %vm105, %v543, %v545
    %v549 = vsel %vm113, %v547, 0
    %551 = vmatprep.subr.mxu0 0.0
    %552 = vmatpush1.msra.mxu0 0.0
    %553 = vmatprep.subr.mxu0 0.0
    %554 = vmatpush1.msra.mxu0 0.0
    %555 = vmatprep.subr.mxu0 0.0
    %556 = vmatpush1.msra.mxu0 0.0
    %557 = vmatprep.subr.mxu0 0.0
    %558 = vmatpush1.msra.mxu0 0.0
    %559 = vmatprep.subr.mxu0 0.0
    %560 = vmatpush1.msra.mxu0 0.0
    %561 = vmatprep.subr.mxu0 0.0
    %562 = vmatpush1.msra.mxu0 0.0
    %563 = vmatprep.subr.mxu0 0.0
    %564 = vmatpush1.msra.mxu0 0.0
    %565 = vmatprep.subr.mxu0 0.0
    %566 = vmatpush1.msra.mxu0 0.0
    %567 = vmatprep.subr.mxu0 0.0
    %568 = vmatpush1.msra.mxu0 0.0
    %569 = vmatprep.subr.mxu0 0.0
    %570 = vmatpush1.msra.mxu0 0.0
    %571 = vmatprep.subr.mxu0 0.0
    %572 = vmatpush1.msra.mxu0 %v83
    %573 = vmatprep.subr.mxu0 0.0
    %574 = vmatpush1.msra.mxu0 %v82
    %575 = vmatprep.subr.mxu0 0.0
    %576 = vmatpush1.msra.mxu0 %v81
    %577 = vmatprep.subr.mxu0 0.0
    %578 = vmatpush1.msra.mxu0 %v80
    %579 = vmatprep.subr.mxu0 0.0
    %580 = vmatpush1.msra.mxu0 %v79
    %581 = vmatprep.subr.mxu0 0.0
    %582 = vmatpush1.msra.mxu0 %v78
    %583 = vmatprep.subr.mxu0 0.0
    %584 = vmatpush2.msra.mxu0 0.0
    %585 = vmatprep.subr.mxu0 0.0
    %586 = vmatpush2.msra.mxu0 0.0
    %587 = vmatprep.subr.mxu0 0.0
    %588 = vmatpush2.msra.mxu0 0.0
    %589 = vmatprep.subr.mxu0 0.0
    %590 = vmatpush2.msra.mxu0 0.0
    %591 = vmatprep.subr.mxu0 0.0
    %592 = vmatpush2.msra.mxu0 0.0
    %593 = vmatprep.subr.mxu0 0.0
    %594 = vmatpush2.msra.mxu0 0.0
    %595 = vmatprep.subr.mxu0 0.0
    %596 = vmatpush2.msra.mxu0 0.0
    %597 = vmatprep.subr.mxu0 0.0
    %598 = vmatpush2.msra.mxu0 0.0
    %599 = vmatprep.subr.mxu0 0.0
    %600 = vmatpush2.msra.mxu0 0.0
    %601 = vmatprep.subr.mxu0 0.0
    %602 = vmatpush2.msra.mxu0 0.0
    %603 = vmatprep.subr.mxu0 0.0
    %604 = vmatpush2.msra.mxu0 0.0
    %605 = vmatprep.subr.mxu0 0.0
    %606 = vmatpush2.msra.mxu0 0.0
    %607 = vmatprep.subr.mxu0 0.0
    %608 = vmatpush2.msra.mxu0 0.0
    %609 = vmatprep.subr.mxu0 0.0
    %610 = vmatpush2.msra.mxu0 0.0
    %611 = vmatprep.subr.mxu0 0.0
    %612 = vmatpush2.msra.mxu0 0.0
    %613 = vmatprep.subr.mxu0 0.0
    %614 = vmatpush2.msra.mxu0 0.0
    %615 = vmatprep.mubr.f32.mxu0 0.0
    %616 = vmatmul.mubr.f32.gmra.mxu0 %v549
    %v617 = vpop.f32.mrf.mxu0
    %v618 = vadd.f32 %v111, %v617
    %v619 = vpop.f32.mrf.mxu0
    %620 = vdwg.mxu0
    %v621 = vxor.u32 %v618, 2147483648
    %v622 = vmul.f32 %v621, 1.442695
    %v623 = vpow.pop %v622
    %v624 = vadd.f32 %v623, 1.0
    %v625 = vrcp.pop %v624
    %v626 = vmul.f32 1.0, %v625
    %v627 = vtanh.pop %v618
    %v628 = vmul.f32 %v626, %v429
    %630 = vrot.lane.b32.xlu0 %v627, 64
    %v631 = vpop.permute.xlu0 %630
    %v633 = vmul.f32 %v626, %v631
    %635 = vrot.lane.b32.xlu0 %v633, 32
    %v636 = vpop.permute.xlu0 %635
    %v638 = vadd.f32 %v628, %v636
    %v639 = vtanh.pop %v638
    %641 = vrot.lane.b32.xlu0 %v639, 64
    %v642 = vpop.permute.xlu0 %641
    %v644 = vmul.f32 %v626, %v642
    %646 = vrot.lane.b32.xlu0 %v644, 32
    %v647 = vpop.permute.xlu0 %646
    %650 = vrot.lane.b32.xlu0 %v541, 64
    %v651 = vpop.permute.xlu0 %650
    %v653 = vsel %vm223, %v647, %v651
    %v655 = vsel %vm231, %v653, 0
    %657 = vmatprep.subr.mxu0 0.0
    %658 = vmatpush1.msra.mxu0 0.0
    %659 = vmatprep.subr.mxu0 0.0
    %660 = vmatpush1.msra.mxu0 0.0
    %661 = vmatprep.subr.mxu0 0.0
    %662 = vmatpush1.msra.mxu0 0.0
    %663 = vmatprep.subr.mxu0 0.0
    %664 = vmatpush1.msra.mxu0 0.0
    %665 = vmatprep.subr.mxu0 0.0
    %666 = vmatpush1.msra.mxu0 0.0
    %667 = vmatprep.subr.mxu0 0.0
    %668 = vmatpush1.msra.mxu0 0.0
    %669 = vmatprep.subr.mxu0 0.0
    %670 = vmatpush1.msra.mxu0 0.0
    %671 = vmatprep.subr.mxu0 0.0
    %672 = vmatpush1.msra.mxu0 0.0
    %673 = vmatprep.subr.mxu0 0.0
    %674 = vmatpush1.msra.mxu0 %v91
    %675 = vmatprep.subr.mxu0 0.0
    %676 = vmatpush1.msra.mxu0 %v90
    %677 = vmatprep.subr.mxu0 0.0
    %678 = vmatpush1.msra.mxu0 %v89
    %679 = vmatprep.subr.mxu0 0.0
    %680 = vmatpush1.msra.mxu0 %v88
    %681 = vmatprep.subr.mxu0 0.0
    %682 = vmatpush1.msra.mxu0 %v87
    %683 = vmatprep.subr.mxu0 0.0
    %684 = vmatpush1.msra.mxu0 %v86
    %685 = vmatprep.subr.mxu0 0.0
    %686 = vmatpush1.msra.mxu0 %v85
    %687 = vmatprep.subr.mxu0 0.0
    %688 = vmatpush1.msra.mxu0 %v84
    %689 = vmatprep.subr.mxu0 0.0
    %690 = vmatpush2.msra.mxu0 0.0
    %691 = vmatprep.subr.mxu0 0.0
    %692 = vmatpush2.msra.mxu0 0.0
    %693 = vmatprep.subr.mxu0 0.0
    %694 = vmatpush2.msra.mxu0 0.0
    %695 = vmatprep.subr.mxu0 0.0
    %696 = vmatpush2.msra.mxu0 0.0
    %697 = vmatprep.subr.mxu0 0.0
    %698 = vmatpush2.msra.mxu0 0.0
    %699 = vmatprep.subr.mxu0 0.0
    %700 = vmatpush2.msra.mxu0 0.0
    %701 = vmatprep.subr.mxu0 0.0
    %702 = vmatpush2.msra.mxu0 0.0
    %703 = vmatprep.subr.mxu0 0.0
    %704 = vmatpush2.msra.mxu0 0.0
    %705 = vmatprep.subr.mxu0 0.0
    %706 = vmatpush2.msra.mxu0 0.0
    %707 = vmatprep.subr.mxu0 0.0
    %708 = vmatpush2.msra.mxu0 0.0
    %709 = vmatprep.subr.mxu0 0.0
    %710 = vmatpush2.msra.mxu0 0.0
    %711 = vmatprep.subr.mxu0 0.0
    %712 = vmatpush2.msra.mxu0 0.0
    %713 = vmatprep.subr.mxu0 0.0
    %714 = vmatpush2.msra.mxu0 0.0
    %715 = vmatprep.subr.mxu0 0.0
    %716 = vmatpush2.msra.mxu0 0.0
    %717 = vmatprep.subr.mxu0 0.0
    %718 = vmatpush2.msra.mxu0 0.0
    %719 = vmatprep.subr.mxu0 0.0
    %720 = vmatpush2.msra.mxu0 0.0
    %721 = vmatprep.mubr.f32.mxu0 0.0
    %722 = vmatmul.mubr.f32.gmra.mxu0 %v655
    %v723 = vpop.f32.mrf.mxu0
    %v724 = vadd.f32 %v229, %v723
    %v725 = vpop.f32.mrf.mxu0
    %726 = vdwg.mxu0
    %v727 = vxor.u32 %v724, 2147483648
    %v728 = vmul.f32 %v727, 1.442695
    %v729 = vpow.pop %v728
    %v730 = vadd.f32 %v729, 1.0
    %v731 = vrcp.pop %v730
    %v732 = vmul.f32 1.0, %v731
    %v733 = vtanh.pop %v724
    %v734 = vmul.f32 %v732, %v535
    %736 = vrot.lane.b32.xlu0 %v733, 64
    %v737 = vpop.permute.xlu0 %736
    %v739 = vmul.f32 %v732, %v737
    %741 = vrot.lane.b32.xlu0 %v739, 32
    %v742 = vpop.permute.xlu0 %741
    %v744 = vadd.f32 %v734, %v742
    %v745 = vtanh.pop %v744
    %747 = vrot.lane.b32.xlu0 %v745, 64
    %v748 = vpop.permute.xlu0 %747
    %v750 = vmul.f32 %v732, %v748
    %s751 = scalar_lea.vmem [#allocation2], 24
    %v752 = vld [vmem:[%s751] sm:$0xff]
    %753 = vrot.lane.b32.xlu0 %v644, 48
    %v754 = vpop.permute.xlu0 %753
    %v756 = vsel %vm105, %v752, %v754
    %v758 = vsel %vm113, %v756, 0
    %760 = vmatprep.subr.mxu0 0.0
    %761 = vmatpush1.msra.mxu0 0.0
    %762 = vmatprep.subr.mxu0 0.0
    %763 = vmatpush1.msra.mxu0 0.0
    %764 = vmatprep.subr.mxu0 0.0
    %765 = vmatpush1.msra.mxu0 0.0
    %766 = vmatprep.subr.mxu0 0.0
    %767 = vmatpush1.msra.mxu0 0.0
    %768 = vmatprep.subr.mxu0 0.0
    %769 = vmatpush1.msra.mxu0 0.0
    %770 = vmatprep.subr.mxu0 0.0
    %771 = vmatpush1.msra.mxu0 0.0
    %772 = vmatprep.subr.mxu0 0.0
    %773 = vmatpush1.msra.mxu0 0.0
    %774 = vmatprep.subr.mxu0 0.0
    %775 = vmatpush1.msra.mxu0 0.0
    %776 = vmatprep.subr.mxu0 0.0
    %777 = vmatpush1.msra.mxu0 0.0
    %778 = vmatprep.subr.mxu0 0.0
    %779 = vmatpush1.msra.mxu0 0.0
    %780 = vmatprep.subr.mxu0 0.0
    %781 = vmatpush1.msra.mxu0 %v83
    %782 = vmatprep.subr.mxu0 0.0
    %783 = vmatpush1.msra.mxu0 %v82
    %784 = vmatprep.subr.mxu0 0.0
    %785 = vmatpush1.msra.mxu0 %v81
    %786 = vmatprep.subr.mxu0 0.0
    %787 = vmatpush1.msra.mxu0 %v80
    %788 = vmatprep.subr.mxu0 0.0
    %789 = vmatpush1.msra.mxu0 %v79
    %790 = vmatprep.subr.mxu0 0.0
    %791 = vmatpush1.msra.mxu0 %v78
    %792 = vmatprep.subr.mxu0 0.0
    %793 = vmatpush2.msra.mxu0 0.0
    %794 = vmatprep.subr.mxu0 0.0
    %795 = vmatpush2.msra.mxu0 0.0
    %796 = vmatprep.subr.mxu0 0.0
    %797 = vmatpush2.msra.mxu0 0.0
    %798 = vmatprep.subr.mxu0 0.0
    %799 = vmatpush2.msra.mxu0 0.0
    %800 = vmatprep.subr.mxu0 0.0
    %801 = vmatpush2.msra.mxu0 0.0
    %802 = vmatprep.subr.mxu0 0.0
    %803 = vmatpush2.msra.mxu0 0.0
    %804 = vmatprep.subr.mxu0 0.0
    %805 = vmatpush2.msra.mxu0 0.0
    %806 = vmatprep.subr.mxu0 0.0
    %807 = vmatpush2.msra.mxu0 0.0
    %808 = vmatprep.subr.mxu0 0.0
    %809 = vmatpush2.msra.mxu0 0.0
    %810 = vmatprep.subr.mxu0 0.0
    %811 = vmatpush2.msra.mxu0 0.0
    %812 = vmatprep.subr.mxu0 0.0
    %813 = vmatpush2.msra.mxu0 0.0
    %814 = vmatprep.subr.mxu0 0.0
    %815 = vmatpush2.msra.mxu0 0.0
    %816 = vmatprep.subr.mxu0 0.0
    %817 = vmatpush2.msra.mxu0 0.0
    %818 = vmatprep.subr.mxu0 0.0
    %819 = vmatpush2.msra.mxu0 0.0
    %820 = vmatprep.subr.mxu0 0.0
    %821 = vmatpush2.msra.mxu0 0.0
    %822 = vmatprep.subr.mxu0 0.0
    %823 = vmatpush2.msra.mxu0 0.0
    %824 = vmatprep.mubr.f32.mxu0 0.0
    %825 = vmatmul.mubr.f32.gmra.mxu0 %v758
    %v826 = vpop.f32.mrf.mxu0
    %v827 = vadd.f32 %v111, %v826
    %v828 = vpop.f32.mrf.mxu0
    %829 = vdwg.mxu0
    %v830 = vxor.u32 %v827, 2147483648
    %v831 = vmul.f32 %v830, 1.442695
    %v832 = vpow.pop %v831
    %v833 = vadd.f32 %v832, 1.0
    %v834 = vrcp.pop %v833
    %v835 = vmul.f32 1.0, %v834
    %v836 = vtanh.pop %v827
    %v837 = vmul.f32 %v835, %v638
    %839 = vrot.lane.b32.xlu0 %v836, 64
    %v840 = vpop.permute.xlu0 %839
    %v842 = vmul.f32 %v835, %v840
    %844 = vrot.lane.b32.xlu0 %v842, 32
    %v845 = vpop.permute.xlu0 %844
    %v847 = vadd.f32 %v837, %v845
    %v848 = vtanh.pop %v847
    %850 = vrot.lane.b32.xlu0 %v848, 64
    %v851 = vpop.permute.xlu0 %850
    %v853 = vmul.f32 %v835, %v851
    %855 = vrot.lane.b32.xlu0 %v853, 32
    %v856 = vpop.permute.xlu0 %855
    %859 = vrot.lane.b32.xlu0 %v750, 64
    %v860 = vpop.permute.xlu0 %859
    %v862 = vsel %vm223, %v856, %v860
    %v864 = vsel %vm231, %v862, 0
    %866 = vmatprep.subr.mxu0 0.0
    %867 = vmatpush1.msra.mxu0 0.0
    %868 = vmatprep.subr.mxu0 0.0
    %869 = vmatpush1.msra.mxu0 0.0
    %870 = vmatprep.subr.mxu0 0.0
    %871 = vmatpush1.msra.mxu0 0.0
    %872 = vmatprep.subr.mxu0 0.0
    %873 = vmatpush1.msra.mxu0 0.0
    %874 = vmatprep.subr.mxu0 0.0
    %875 = vmatpush1.msra.mxu0 0.0
    %876 = vmatprep.subr.mxu0 0.0
    %877 = vmatpush1.msra.mxu0 0.0
    %878 = vmatprep.subr.mxu0 0.0
    %879 = vmatpush1.msra.mxu0 0.0
    %880 = vmatprep.subr.mxu0 0.0
    %881 = vmatpush1.msra.mxu0 0.0
    %882 = vmatprep.subr.mxu0 0.0
    %883 = vmatpush1.msra.mxu0 %v91
    %884 = vmatprep.subr.mxu0 0.0
    %885 = vmatpush1.msra.mxu0 %v90
    %886 = vmatprep.subr.mxu0 0.0
    %887 = vmatpush1.msra.mxu0 %v89
    %888 = vmatprep.subr.mxu0 0.0
    %889 = vmatpush1.msra.mxu0 %v88
    %890 = vmatprep.subr.mxu0 0.0
    %891 = vmatpush1.msra.mxu0 %v87
    %892 = vmatprep.subr.mxu0 0.0
    %893 = vmatpush1.msra.mxu0 %v86
    %894 = vmatprep.subr.mxu0 0.0
    %895 = vmatpush1.msra.mxu0 %v85
    %896 = vmatprep.subr.mxu0 0.0
    %897 = vmatpush1.msra.mxu0 %v84
    %898 = vmatprep.subr.mxu0 0.0
    %899 = vmatpush2.msra.mxu0 0.0
    %900 = vmatprep.subr.mxu0 0.0
    %901 = vmatpush2.msra.mxu0 0.0
    %902 = vmatprep.subr.mxu0 0.0
    %903 = vmatpush2.msra.mxu0 0.0
    %904 = vmatprep.subr.mxu0 0.0
    %905 = vmatpush2.msra.mxu0 0.0
    %906 = vmatprep.subr.mxu0 0.0
    %907 = vmatpush2.msra.mxu0 0.0
    %908 = vmatprep.subr.mxu0 0.0
    %909 = vmatpush2.msra.mxu0 0.0
    %910 = vmatprep.subr.mxu0 0.0
    %911 = vmatpush2.msra.mxu0 0.0
    %912 = vmatprep.subr.mxu0 0.0
    %913 = vmatpush2.msra.mxu0 0.0
    %914 = vmatprep.subr.mxu0 0.0
    %915 = vmatpush2.msra.mxu0 0.0
    %916 = vmatprep.subr.mxu0 0.0
    %917 = vmatpush2.msra.mxu0 0.0
    %918 = vmatprep.subr.mxu0 0.0
    %919 = vmatpush2.msra.mxu0 0.0
    %920 = vmatprep.subr.mxu0 0.0
    %921 = vmatpush2.msra.mxu0 0.0
    %922 = vmatprep.subr.mxu0 0.0
    %923 = vmatpush2.msra.mxu0 0.0
    %924 = vmatprep.subr.mxu0 0.0
    %925 = vmatpush2.msra.mxu0 0.0
    %926 = vmatprep.subr.mxu0 0.0
    %927 = vmatpush2.msra.mxu0 0.0
    %928 = vmatprep.subr.mxu0 0.0
    %929 = vmatpush2.msra.mxu0 0.0
    %930 = vmatprep.mubr.f32.mxu0 0.0
    %931 = vmatmul.mubr.f32.gmra.mxu0 %v864
    %v932 = vpop.f32.mrf.mxu0
    %v933 = vadd.f32 %v229, %v932
    %v934 = vpop.f32.mrf.mxu0
    %935 = vdwg.mxu0
    %v936 = vxor.u32 %v933, 2147483648
    %v937 = vmul.f32 %v936, 1.442695
    %v938 = vpow.pop %v937
    %v939 = vadd.f32 %v938, 1.0
    %v940 = vrcp.pop %v939
    %v941 = vmul.f32 1.0, %v940
    %v942 = vtanh.pop %v933
    %v943 = vmul.f32 %v941, %v744
    %945 = vrot.lane.b32.xlu0 %v942, 64
    %v946 = vpop.permute.xlu0 %945
    %v948 = vmul.f32 %v941, %v946
    %950 = vrot.lane.b32.xlu0 %v948, 32
    %v951 = vpop.permute.xlu0 %950
    %v953 = vadd.f32 %v943, %v951
    %v954 = vtanh.pop %v953
    %956 = vrot.lane.b32.xlu0 %v954, 64
    %v957 = vpop.permute.xlu0 %956
    %v959 = vmul.f32 %v941, %v957
    %s960 = scalar_lea.vmem [#allocation2], 32
    %v961 = vld [vmem:[%s960] sm:$0xff]
    %962 = vrot.lane.b32.xlu0 %v853, 48
    %v963 = vpop.permute.xlu0 %962
    %v965 = vsel %vm105, %v961, %v963
    %v967 = vsel %vm113, %v965, 0
    %969 = vmatprep.subr.mxu0 0.0
    %970 = vmatpush1.msra.mxu0 0.0
    %971 = vmatprep.subr.mxu0 0.0
    %972 = vmatpush1.msra.mxu0 0.0
    %973 = vmatprep.subr.mxu0 0.0
    %974 = vmatpush1.msra.mxu0 0.0
    %975 = vmatprep.subr.mxu0 0.0
    %976 = vmatpush1.msra.mxu0 0.0
    %977 = vmatprep.subr.mxu0 0.0
    %978 = vmatpush1.msra.mxu0 0.0
    %979 = vmatprep.subr.mxu0 0.0
    %980 = vmatpush1.msra.mxu0 0.0
    %981 = vmatprep.subr.mxu0 0.0
    %982 = vmatpush1.msra.mxu0 0.0
    %983 = vmatprep.subr.mxu0 0.0
    %984 = vmatpush1.msra.mxu0 0.0
    %985 = vmatprep.subr.mxu0 0.0
    %986 = vmatpush1.msra.mxu0 0.0
    %987 = vmatprep.subr.mxu0 0.0
    %988 = vmatpush1.msra.mxu0 0.0
    %989 = vmatprep.subr.mxu0 0.0
    %990 = vmatpush1.msra.mxu0 %v83
    %991 = vmatprep.subr.mxu0 0.0
    %992 = vmatpush1.msra.mxu0 %v82
    %993 = vmatprep.subr.mxu0 0.0
    %994 = vmatpush1.msra.mxu0 %v81
    %995 = vmatprep.subr.mxu0 0.0
    %996 = vmatpush1.msra.mxu0 %v80
    %997 = vmatprep.subr.mxu0 0.0
    %998 = vmatpush1.msra.mxu0 %v79
    %999 = vmatprep.subr.mxu0 0.0
    %1000 = vmatpush1.msra.mxu0 %v78
    %1001 = vmatprep.subr.mxu0 0.0
    %1002 = vmatpush2.msra.mxu0 0.0
    %1003 = vmatprep.subr.mxu0 0.0
    %1004 = vmatpush2.msra.mxu0 0.0
    %1005 = vmatprep.subr.mxu0 0.0
    %1006 = vmatpush2.msra.mxu0 0.0
    %1007 = vmatprep.subr.mxu0 0.0
    %1008 = vmatpush2.msra.mxu0 0.0
    %1009 = vmatprep.subr.mxu0 0.0
    %1010 = vmatpush2.msra.mxu0 0.0
    %1011 = vmatprep.subr.mxu0 0.0
    %1012 = vmatpush2.msra.mxu0 0.0
    %1013 = vmatprep.subr.mxu0 0.0
    %1014 = vmatpush2.msra.mxu0 0.0
    %1015 = vmatprep.subr.mxu0 0.0
    %1016 = vmatpush2.msra.mxu0 0.0
    %1017 = vmatprep.subr.mxu0 0.0
    %1018 = vmatpush2.msra.mxu0 0.0
    %1019 = vmatprep.subr.mxu0 0.0
    %1020 = vmatpush2.msra.mxu0 0.0
    %1021 = vmatprep.subr.mxu0 0.0
    %1022 = vmatpush2.msra.mxu0 0.0
    %1023 = vmatprep.subr.mxu0 0.0
    %1024 = vmatpush2.msra.mxu0 0.0
    %1025 = vmatprep.subr.mxu0 0.0
    %1026 = vmatpush2.msra.mxu0 0.0
    %1027 = vmatprep.subr.mxu0 0.0
    %1028 = vmatpush2.msra.mxu0 0.0
    %1029 = vmatprep.subr.mxu0 0.0
    %1030 = vmatpush2.msra.mxu0 0.0
    %1031 = vmatprep.subr.mxu0 0.0
    %1032 = vmatpush2.msra.mxu0 0.0
    %1033 = vmatprep.mubr.f32.mxu0 0.0
    %1034 = vmatmul.mubr.f32.gmra.mxu0 %v967
    %v1035 = vpop.f32.mrf.mxu0
    %v1036 = vadd.f32 %v111, %v1035
    %v1037 = vpop.f32.mrf.mxu0
    %1038 = vdwg.mxu0
    %v1039 = vxor.u32 %v1036, 2147483648
    %v1040 = vmul.f32 %v1039, 1.442695
    %v1041 = vpow.pop %v1040
    %v1042 = vadd.f32 %v1041, 1.0
    %v1043 = vrcp.pop %v1042
    %v1044 = vmul.f32 1.0, %v1043
    %v1045 = vtanh.pop %v1036
    %v1046 = vmul.f32 %v1044, %v847
    %1048 = vrot.lane.b32.xlu0 %v1045, 64
    %v1049 = vpop.permute.xlu0 %1048
    %v1051 = vmul.f32 %v1044, %v1049
    %1053 = vrot.lane.b32.xlu0 %v1051, 32
    %v1054 = vpop.permute.xlu0 %1053
    %v1056 = vadd.f32 %v1046, %v1054
    %v1057 = vtanh.pop %v1056
    %1059 = vrot.lane.b32.xlu0 %v1057, 64
    %v1060 = vpop.permute.xlu0 %1059
    %v1062 = vmul.f32 %v1044, %v1060
    %1064 = vrot.lane.b32.xlu0 %v1062, 32
    %v1065 = vpop.permute.xlu0 %1064
    %1068 = vrot.lane.b32.xlu0 %v959, 64
    %v1069 = vpop.permute.xlu0 %1068
    %v1071 = vsel %vm223, %v1065, %v1069
    %v1073 = vsel %vm231, %v1071, 0
    %1075 = vmatprep.subr.mxu0 0.0
    %1076 = vmatpush1.msra.mxu0 0.0
    %1077 = vmatprep.subr.mxu0 0.0
    %1078 = vmatpush1.msra.mxu0 0.0
    %1079 = vmatprep.subr.mxu0 0.0
    %1080 = vmatpush1.msra.mxu0 0.0
    %1081 = vmatprep.subr.mxu0 0.0
    %1082 = vmatpush1.msra.mxu0 0.0
    %1083 = vmatprep.subr.mxu0 0.0
    %1084 = vmatpush1.msra.mxu0 0.0
    %1085 = vmatprep.subr.mxu0 0.0
    %1086 = vmatpush1.msra.mxu0 0.0
    %1087 = vmatprep.subr.mxu0 0.0
    %1088 = vmatpush1.msra.mxu0 0.0
    %1089 = vmatprep.subr.mxu0 0.0
    %1090 = vmatpush1.msra.mxu0 0.0
    %1091 = vmatprep.subr.mxu0 0.0
    %1092 = vmatpush1.msra.mxu0 %v91
    %1093 = vmatprep.subr.mxu0 0.0
    %1094 = vmatpush1.msra.mxu0 %v90
    %1095 = vmatprep.subr.mxu0 0.0
    %1096 = vmatpush1.msra.mxu0 %v89
    %1097 = vmatprep.subr.mxu0 0.0
    %1098 = vmatpush1.msra.mxu0 %v88
    %1099 = vmatprep.subr.mxu0 0.0
    %1100 = vmatpush1.msra.mxu0 %v87
    %1101 = vmatprep.subr.mxu0 0.0
    %1102 = vmatpush1.msra.mxu0 %v86
    %1103 = vmatprep.subr.mxu0 0.0
    %1104 = vmatpush1.msra.mxu0 %v85
    %1105 = vmatprep.subr.mxu0 0.0
    %1106 = vmatpush1.msra.mxu0 %v84
    %1107 = vmatprep.subr.mxu0 0.0
    %1108 = vmatpush2.msra.mxu0 0.0
    %1109 = vmatprep.subr.mxu0 0.0
    %1110 = vmatpush2.msra.mxu0 0.0
    %1111 = vmatprep.subr.mxu0 0.0
    %1112 = vmatpush2.msra.mxu0 0.0
    %1113 = vmatprep.subr.mxu0 0.0
    %1114 = vmatpush2.msra.mxu0 0.0
    %1115 = vmatprep.subr.mxu0 0.0
    %1116 = vmatpush2.msra.mxu0 0.0
    %1117 = vmatprep.subr.mxu0 0.0
    %1118 = vmatpush2.msra.mxu0 0.0
    %1119 = vmatprep.subr.mxu0 0.0
    %1120 = vmatpush2.msra.mxu0 0.0
    %1121 = vmatprep.subr.mxu0 0.0
    %1122 = vmatpush2.msra.mxu0 0.0
    %1123 = vmatprep.subr.mxu0 0.0
    %1124 = vmatpush2.msra.mxu0 0.0
    %1125 = vmatprep.subr.mxu0 0.0
    %1126 = vmatpush2.msra.mxu0 0.0
    %1127 = vmatprep.subr.mxu0 0.0
    %1128 = vmatpush2.msra.mxu0 0.0
    %1129 = vmatprep.subr.mxu0 0.0
    %1130 = vmatpush2.msra.mxu0 0.0
    %1131 = vmatprep.subr.mxu0 0.0
    %1132 = vmatpush2.msra.mxu0 0.0
    %1133 = vmatprep.subr.mxu0 0.0
    %1134 = vmatpush2.msra.mxu0 0.0
    %1135 = vmatprep.subr.mxu0 0.0
    %1136 = vmatpush2.msra.mxu0 0.0
    %1137 = vmatprep.subr.mxu0 0.0
    %1138 = vmatpush2.msra.mxu0 0.0
    %1139 = vmatprep.mubr.f32.mxu0 0.0
    %1140 = vmatmul.mubr.f32.gmra.mxu0 %v1073
    %v1141 = vpop.f32.mrf.mxu0
    %v1142 = vadd.f32 %v229, %v1141
    %v1143 = vpop.f32.mrf.mxu0
    %1144 = vdwg.mxu0
    %v1145 = vxor.u32 %v1142, 2147483648
    %v1146 = vmul.f32 %v1145, 1.442695
    %v1147 = vpow.pop %v1146
    %v1148 = vadd.f32 %v1147, 1.0
    %v1149 = vrcp.pop %v1148
    %v1150 = vmul.f32 1.0, %v1149
    %v1151 = vtanh.pop %v1142
    %v1152 = vmul.f32 %v1150, %v953
    %1154 = vrot.lane.b32.xlu0 %v1151, 64
    %v1155 = vpop.permute.xlu0 %1154
    %v1157 = vmul.f32 %v1150, %v1155
    %1159 = vrot.lane.b32.xlu0 %v1157, 32
    %v1160 = vpop.permute.xlu0 %1159
    %v1162 = vadd.f32 %v1152, %v1160
    %v1163 = vtanh.pop %v1162
    %1165 = vrot.lane.b32.xlu0 %v1163, 64
    %v1166 = vpop.permute.xlu0 %1165
    %v1168 = vmul.f32 %v1150, %v1166
    %s1169 = scalar_lea.vmem [#allocation2], 40
    %v1170 = vld [vmem:[%s1169] sm:$0xff]
    %1171 = vrot.lane.b32.xlu0 %v1062, 48
    %v1172 = vpop.permute.xlu0 %1171
    %v1174 = vsel %vm105, %v1170, %v1172
    %v1176 = vsel %vm113, %v1174, 0
    %1178 = vmatprep.subr.mxu0 0.0
    %1179 = vmatpush1.msra.mxu0 0.0
    %1180 = vmatprep.subr.mxu0 0.0
    %1181 = vmatpush1.msra.mxu0 0.0
    %1182 = vmatprep.subr.mxu0 0.0
    %1183 = vmatpush1.msra.mxu0 0.0
    %1184 = vmatprep.subr.mxu0 0.0
    %1185 = vmatpush1.msra.mxu0 0.0
    %1186 = vmatprep.subr.mxu0 0.0
    %1187 = vmatpush1.msra.mxu0 0.0
    %1188 = vmatprep.subr.mxu0 0.0
    %1189 = vmatpush1.msra.mxu0 0.0
    %1190 = vmatprep.subr.mxu0 0.0
    %1191 = vmatpush1.msra.mxu0 0.0
    %1192 = vmatprep.subr.mxu0 0.0
    %1193 = vmatpush1.msra.mxu0 0.0
    %1194 = vmatprep.subr.mxu0 0.0
    %1195 = vmatpush1.msra.mxu0 0.0
    %1196 = vmatprep.subr.mxu0 0.0
    %1197 = vmatpush1.msra.mxu0 0.0
    %1198 = vmatprep.subr.mxu0 0.0
    %1199 = vmatpush1.msra.mxu0 %v83
    %1200 = vmatprep.subr.mxu0 0.0
    %1201 = vmatpush1.msra.mxu0 %v82
    %1202 = vmatprep.subr.mxu0 0.0
    %1203 = vmatpush1.msra.mxu0 %v81
    %1204 = vmatprep.subr.mxu0 0.0
    %1205 = vmatpush1.msra.mxu0 %v80
    %1206 = vmatprep.subr.mxu0 0.0
    %1207 = vmatpush1.msra.mxu0 %v79
    %1208 = vmatprep.subr.mxu0 0.0
    %1209 = vmatpush1.msra.mxu0 %v78
    %1210 = vmatprep.subr.mxu0 0.0
    %1211 = vmatpush2.msra.mxu0 0.0
    %1212 = vmatprep.subr.mxu0 0.0
    %1213 = vmatpush2.msra.mxu0 0.0
    %1214 = vmatprep.subr.mxu0 0.0
    %1215 = vmatpush2.msra.mxu0 0.0
    %1216 = vmatprep.subr.mxu0 0.0
    %1217 = vmatpush2.msra.mxu0 0.0
    %1218 = vmatprep.subr.mxu0 0.0
    %1219 = vmatpush2.msra.mxu0 0.0
    %1220 = vmatprep.subr.mxu0 0.0
    %1221 = vmatpush2.msra.mxu0 0.0
    %1222 = vmatprep.subr.mxu0 0.0
    %1223 = vmatpush2.msra.mxu0 0.0
    %1224 = vmatprep.subr.mxu0 0.0
    %1225 = vmatpush2.msra.mxu0 0.0
    %1226 = vmatprep.subr.mxu0 0.0
    %1227 = vmatpush2.msra.mxu0 0.0
    %1228 = vmatprep.subr.mxu0 0.0
    %1229 = vmatpush2.msra.mxu0 0.0
    %1230 = vmatprep.subr.mxu0 0.0
    %1231 = vmatpush2.msra.mxu0 0.0
    %1232 = vmatprep.subr.mxu0 0.0
    %1233 = vmatpush2.msra.mxu0 0.0
    %1234 = vmatprep.subr.mxu0 0.0
    %1235 = vmatpush2.msra.mxu0 0.0
    %1236 = vmatprep.subr.mxu0 0.0
    %1237 = vmatpush2.msra.mxu0 0.0
    %1238 = vmatprep.subr.mxu0 0.0
    %1239 = vmatpush2.msra.mxu0 0.0
    %1240 = vmatprep.subr.mxu0 0.0
    %1241 = vmatpush2.msra.mxu0 0.0
    %1242 = vmatprep.mubr.f32.mxu0 0.0
    %1243 = vmatmul.mubr.f32.gmra.mxu0 %v1176
    %v1244 = vpop.f32.mrf.mxu0
    %v1245 = vadd.f32 %v111, %v1244
    %v1246 = vpop.f32.mrf.mxu0
    %1247 = vdwg.mxu0
    %v1248 = vxor.u32 %v1245, 2147483648
    %v1249 = vmul.f32 %v1248, 1.442695
    %v1250 = vpow.pop %v1249
    %v1251 = vadd.f32 %v1250, 1.0
    %v1252 = vrcp.pop %v1251
    %v1253 = vmul.f32 1.0, %v1252
    %v1254 = vtanh.pop %v1245
    %v1255 = vmul.f32 %v1253, %v1056
    %1257 = vrot.lane.b32.xlu0 %v1254, 64
    %v1258 = vpop.permute.xlu0 %1257
    %v1260 = vmul.f32 %v1253, %v1258
    %1262 = vrot.lane.b32.xlu0 %v1260, 32
    %v1263 = vpop.permute.xlu0 %1262
    %v1265 = vadd.f32 %v1255, %v1263
    %v1266 = vtanh.pop %v1265
    %1268 = vrot.lane.b32.xlu0 %v1266, 64
    %v1269 = vpop.permute.xlu0 %1268
    %v1271 = vmul.f32 %v1253, %v1269
    %1273 = vrot.lane.b32.xlu0 %v1271, 32
    %v1274 = vpop.permute.xlu0 %1273
    %1277 = vrot.lane.b32.xlu0 %v1168, 64
    %v1278 = vpop.permute.xlu0 %1277
    %v1280 = vsel %vm223, %v1274, %v1278
    %v1282 = vsel %vm231, %v1280, 0
    %1284 = vmatprep.subr.mxu0 0.0
    %1285 = vmatpush1.msra.mxu0 0.0
    %1286 = vmatprep.subr.mxu0 0.0
    %1287 = vmatpush1.msra.mxu0 0.0
    %1288 = vmatprep.subr.mxu0 0.0
    %1289 = vmatpush1.msra.mxu0 0.0
    %1290 = vmatprep.subr.mxu0 0.0
    %1291 = vmatpush1.msra.mxu0 0.0
    %1292 = vmatprep.subr.mxu0 0.0
    %1293 = vmatpush1.msra.mxu0 0.0
    %1294 = vmatprep.subr.mxu0 0.0
    %1295 = vmatpush1.msra.mxu0 0.0
    %1296 = vmatprep.subr.mxu0 0.0
    %1297 = vmatpush1.msra.mxu0 0.0
    %1298 = vmatprep.subr.mxu0 0.0
    %1299 = vmatpush1.msra.mxu0 0.0
    %1300 = vmatprep.subr.mxu0 0.0
    %1301 = vmatpush1.msra.mxu0 %v91
    %1302 = vmatprep.subr.mxu0 0.0
    %1303 = vmatpush1.msra.mxu0 %v90
    %1304 = vmatprep.subr.mxu0 0.0
    %1305 = vmatpush1.msra.mxu0 %v89
    %1306 = vmatprep.subr.mxu0 0.0
    %1307 = vmatpush1.msra.mxu0 %v88
    %1308 = vmatprep.subr.mxu0 0.0
    %1309 = vmatpush1.msra.mxu0 %v87
    %1310 = vmatprep.subr.mxu0 0.0
    %1311 = vmatpush1.msra.mxu0 %v86
    %1312 = vmatprep.subr.mxu0 0.0
    %1313 = vmatpush1.msra.mxu0 %v85
    %1314 = vmatprep.subr.mxu0 0.0
    %1315 = vmatpush1.msra.mxu0 %v84
    %1316 = vmatprep.subr.mxu0 0.0
    %1317 = vmatpush2.msra.mxu0 0.0
    %1318 = vmatprep.subr.mxu0 0.0
    %1319 = vmatpush2.msra.mxu0 0.0
    %1320 = vmatprep.subr.mxu0 0.0
    %1321 = vmatpush2.msra.mxu0 0.0
    %1322 = vmatprep.subr.mxu0 0.0
    %1323 = vmatpush2.msra.mxu0 0.0
    %1324 = vmatprep.subr.mxu0 0.0
    %1325 = vmatpush2.msra.mxu0 0.0
    %1326 = vmatprep.subr.mxu0 0.0
    %1327 = vmatpush2.msra.mxu0 0.0
    %1328 = vmatprep.subr.mxu0 0.0
    %1329 = vmatpush2.msra.mxu0 0.0
    %1330 = vmatprep.subr.mxu0 0.0
    %1331 = vmatpush2.msra.mxu0 0.0
    %1332 = vmatprep.subr.mxu0 0.0
    %1333 = vmatpush2.msra.mxu0 0.0
    %1334 = vmatprep.subr.mxu0 0.0
    %1335 = vmatpush2.msra.mxu0 0.0
    %1336 = vmatprep.subr.mxu0 0.0
    %1337 = vmatpush2.msra.mxu0 0.0
    %1338 = vmatprep.subr.mxu0 0.0
    %1339 = vmatpush2.msra.mxu0 0.0
    %1340 = vmatprep.subr.mxu0 0.0
    %1341 = vmatpush2.msra.mxu0 0.0
    %1342 = vmatprep.subr.mxu0 0.0
    %1343 = vmatpush2.msra.mxu0 0.0
    %1344 = vmatprep.subr.mxu0 0.0
    %1345 = vmatpush2.msra.mxu0 0.0
    %1346 = vmatprep.subr.mxu0 0.0
    %1347 = vmatpush2.msra.mxu0 0.0
    %1348 = vmatprep.mubr.f32.mxu0 0.0
    %1349 = vmatmul.mubr.f32.gmra.mxu0 %v1282
    %v1350 = vpop.f32.mrf.mxu0
    %v1351 = vadd.f32 %v229, %v1350
    %v1352 = vpop.f32.mrf.mxu0
    %1353 = vdwg.mxu0
    %v1354 = vxor.u32 %v1351, 2147483648
    %v1355 = vmul.f32 %v1354, 1.442695
    %v1356 = vpow.pop %v1355
    %v1357 = vadd.f32 %v1356, 1.0
    %v1358 = vrcp.pop %v1357
    %v1359 = vmul.f32 1.0, %v1358
    %v1360 = vtanh.pop %v1351
    %v1361 = vmul.f32 %v1359, %v1162
    %1363 = vrot.lane.b32.xlu0 %v1360, 64
    %v1364 = vpop.permute.xlu0 %1363
    %v1366 = vmul.f32 %v1359, %v1364
    %1368 = vrot.lane.b32.xlu0 %v1366, 32
    %v1369 = vpop.permute.xlu0 %1368
    %v1371 = vadd.f32 %v1361, %v1369
    %v1372 = vtanh.pop %v1371
    %1374 = vrot.lane.b32.xlu0 %v1372, 64
    %v1375 = vpop.permute.xlu0 %1374
    %v1377 = vmul.f32 %v1359, %v1375
    %s1378 = scalar_lea.vmem [#allocation2], 48
    %v1379 = vld [vmem:[%s1378] sm:$0xff]
    %1380 = vrot.lane.b32.xlu0 %v1271, 48
    %v1381 = vpop.permute.xlu0 %1380
    %v1383 = vsel %vm105, %v1379, %v1381
    %v1385 = vsel %vm113, %v1383, 0
    %1387 = vmatprep.subr.mxu0 0.0
    %1388 = vmatpush1.msra.mxu0 0.0
    %1389 = vmatprep.subr.mxu0 0.0
    %1390 = vmatpush1.msra.mxu0 0.0
    %1391 = vmatprep.subr.mxu0 0.0
    %1392 = vmatpush1.msra.mxu0 0.0
    %1393 = vmatprep.subr.mxu0 0.0
    %1394 = vmatpush1.msra.mxu0 0.0
    %1395 = vmatprep.subr.mxu0 0.0
    %1396 = vmatpush1.msra.mxu0 0.0
    %1397 = vmatprep.subr.mxu0 0.0
    %1398 = vmatpush1.msra.mxu0 0.0
    %1399 = vmatprep.subr.mxu0 0.0
    %1400 = vmatpush1.msra.mxu0 0.0
    %1401 = vmatprep.subr.mxu0 0.0
    %1402 = vmatpush1.msra.mxu0 0.0
    %1403 = vmatprep.subr.mxu0 0.0
    %1404 = vmatpush1.msra.mxu0 0.0
    %1405 = vmatprep.subr.mxu0 0.0
    %1406 = vmatpush1.msra.mxu0 0.0
    %1407 = vmatprep.subr.mxu0 0.0
    %1408 = vmatpush1.msra.mxu0 %v83
    %1409 = vmatprep.subr.mxu0 0.0
    %1410 = vmatpush1.msra.mxu0 %v82
    %1411 = vmatprep.subr.mxu0 0.0
    %1412 = vmatpush1.msra.mxu0 %v81
    %1413 = vmatprep.subr.mxu0 0.0
    %1414 = vmatpush1.msra.mxu0 %v80
    %1415 = vmatprep.subr.mxu0 0.0
    %1416 = vmatpush1.msra.mxu0 %v79
    %1417 = vmatprep.subr.mxu0 0.0
    %1418 = vmatpush1.msra.mxu0 %v78
    %1419 = vmatprep.subr.mxu0 0.0
    %1420 = vmatpush2.msra.mxu0 0.0
    %1421 = vmatprep.subr.mxu0 0.0
    %1422 = vmatpush2.msra.mxu0 0.0
    %1423 = vmatprep.subr.mxu0 0.0
    %1424 = vmatpush2.msra.mxu0 0.0
    %1425 = vmatprep.subr.mxu0 0.0
    %1426 = vmatpush2.msra.mxu0 0.0
    %1427 = vmatprep.subr.mxu0 0.0
    %1428 = vmatpush2.msra.mxu0 0.0
    %1429 = vmatprep.subr.mxu0 0.0
    %1430 = vmatpush2.msra.mxu0 0.0
    %1431 = vmatprep.subr.mxu0 0.0
    %1432 = vmatpush2.msra.mxu0 0.0
    %1433 = vmatprep.subr.mxu0 0.0
    %1434 = vmatpush2.msra.mxu0 0.0
    %1435 = vmatprep.subr.mxu0 0.0
    %1436 = vmatpush2.msra.mxu0 0.0
    %1437 = vmatprep.subr.mxu0 0.0
    %1438 = vmatpush2.msra.mxu0 0.0
    %1439 = vmatprep.subr.mxu0 0.0
    %1440 = vmatpush2.msra.mxu0 0.0
    %1441 = vmatprep.subr.mxu0 0.0
    %1442 = vmatpush2.msra.mxu0 0.0
    %1443 = vmatprep.subr.mxu0 0.0
    %1444 = vmatpush2.msra.mxu0 0.0
    %1445 = vmatprep.subr.mxu0 0.0
    %1446 = vmatpush2.msra.mxu0 0.0
    %1447 = vmatprep.subr.mxu0 0.0
    %1448 = vmatpush2.msra.mxu0 0.0
    %1449 = vmatprep.subr.mxu0 0.0
    %1450 = vmatpush2.msra.mxu0 0.0
    %1451 = vmatprep.mubr.f32.mxu0 0.0
    %1452 = vmatmul.mubr.f32.gmra.mxu0 %v1385
    %v1453 = vpop.f32.mrf.mxu0
    %v1454 = vadd.f32 %v111, %v1453
    %v1455 = vpop.f32.mrf.mxu0
    %1456 = vdwg.mxu0
    %v1457 = vxor.u32 %v1454, 2147483648
    %v1458 = vmul.f32 %v1457, 1.442695
    %v1459 = vpow.pop %v1458
    %v1460 = vadd.f32 %v1459, 1.0
    %v1461 = vrcp.pop %v1460
    %v1462 = vmul.f32 1.0, %v1461
    %v1463 = vtanh.pop %v1454
    %v1464 = vmul.f32 %v1462, %v1265
    %1466 = vrot.lane.b32.xlu0 %v1463, 64
    %v1467 = vpop.permute.xlu0 %1466
    %v1469 = vmul.f32 %v1462, %v1467
    %1471 = vrot.lane.b32.xlu0 %v1469, 32
    %v1472 = vpop.permute.xlu0 %1471
    %v1474 = vadd.f32 %v1464, %v1472
    %v1475 = vtanh.pop %v1474
    %1477 = vrot.lane.b32.xlu0 %v1475, 64
    %v1478 = vpop.permute.xlu0 %1477
    %v1480 = vmul.f32 %v1462, %v1478
    %1482 = vrot.lane.b32.xlu0 %v1480, 32
    %v1483 = vpop.permute.xlu0 %1482
    %1486 = vrot.lane.b32.xlu0 %v1377, 64
    %v1487 = vpop.permute.xlu0 %1486
    %v1489 = vsel %vm223, %v1483, %v1487
    %v1491 = vsel %vm231, %v1489, 0
    %1493 = vmatprep.subr.mxu0 0.0
    %1494 = vmatpush1.msra.mxu0 0.0
    %1495 = vmatprep.subr.mxu0 0.0
    %1496 = vmatpush1.msra.mxu0 0.0
    %1497 = vmatprep.subr.mxu0 0.0
    %1498 = vmatpush1.msra.mxu0 0.0
    %1499 = vmatprep.subr.mxu0 0.0
    %1500 = vmatpush1.msra.mxu0 0.0
    %1501 = vmatprep.subr.mxu0 0.0
    %1502 = vmatpush1.msra.mxu0 0.0
    %1503 = vmatprep.subr.mxu0 0.0
    %1504 = vmatpush1.msra.mxu0 0.0
    %1505 = vmatprep.subr.mxu0 0.0
    %1506 = vmatpush1.msra.mxu0 0.0
    %1507 = vmatprep.subr.mxu0 0.0
    %1508 = vmatpush1.msra.mxu0 0.0
    %1509 = vmatprep.subr.mxu0 0.0
    %1510 = vmatpush1.msra.mxu0 %v91
    %1511 = vmatprep.subr.mxu0 0.0
    %1512 = vmatpush1.msra.mxu0 %v90
    %1513 = vmatprep.subr.mxu0 0.0
    %1514 = vmatpush1.msra.mxu0 %v89
    %1515 = vmatprep.subr.mxu0 0.0
    %1516 = vmatpush1.msra.mxu0 %v88
    %1517 = vmatprep.subr.mxu0 0.0
    %1518 = vmatpush1.msra.mxu0 %v87
    %1519 = vmatprep.subr.mxu0 0.0
    %1520 = vmatpush1.msra.mxu0 %v86
    %1521 = vmatprep.subr.mxu0 0.0
    %1522 = vmatpush1.msra.mxu0 %v85
    %1523 = vmatprep.subr.mxu0 0.0
    %1524 = vmatpush1.msra.mxu0 %v84
    %1525 = vmatprep.subr.mxu0 0.0
    %1526 = vmatpush2.msra.mxu0 0.0
    %1527 = vmatprep.subr.mxu0 0.0
    %1528 = vmatpush2.msra.mxu0 0.0
    %1529 = vmatprep.subr.mxu0 0.0
    %1530 = vmatpush2.msra.mxu0 0.0
    %1531 = vmatprep.subr.mxu0 0.0
    %1532 = vmatpush2.msra.mxu0 0.0
    %1533 = vmatprep.subr.mxu0 0.0
    %1534 = vmatpush2.msra.mxu0 0.0
    %1535 = vmatprep.subr.mxu0 0.0
    %1536 = vmatpush2.msra.mxu0 0.0
    %1537 = vmatprep.subr.mxu0 0.0
    %1538 = vmatpush2.msra.mxu0 0.0
    %1539 = vmatprep.subr.mxu0 0.0
    %1540 = vmatpush2.msra.mxu0 0.0
    %1541 = vmatprep.subr.mxu0 0.0
    %1542 = vmatpush2.msra.mxu0 0.0
    %1543 = vmatprep.subr.mxu0 0.0
    %1544 = vmatpush2.msra.mxu0 0.0
    %1545 = vmatprep.subr.mxu0 0.0
    %1546 = vmatpush2.msra.mxu0 0.0
    %1547 = vmatprep.subr.mxu0 0.0
    %1548 = vmatpush2.msra.mxu0 0.0
    %1549 = vmatprep.subr.mxu0 0.0
    %1550 = vmatpush2.msra.mxu0 0.0
    %1551 = vmatprep.subr.mxu0 0.0
    %1552 = vmatpush2.msra.mxu0 0.0
    %1553 = vmatprep.subr.mxu0 0.0
    %1554 = vmatpush2.msra.mxu0 0.0
    %1555 = vmatprep.subr.mxu0 0.0
    %1556 = vmatpush2.msra.mxu0 0.0
    %1557 = vmatprep.mubr.f32.mxu0 0.0
    %1558 = vmatmul.mubr.f32.gmra.mxu0 %v1491
    %v1559 = vpop.f32.mrf.mxu0
    %v1560 = vadd.f32 %v229, %v1559
    %v1561 = vpop.f32.mrf.mxu0
    %1562 = vdwg.mxu0
    %v1563 = vxor.u32 %v1560, 2147483648
    %v1564 = vmul.f32 %v1563, 1.442695
    %v1565 = vpow.pop %v1564
    %v1566 = vadd.f32 %v1565, 1.0
    %v1567 = vrcp.pop %v1566
    %v1568 = vmul.f32 1.0, %v1567
    %v1569 = vtanh.pop %v1560
    %v1570 = vmul.f32 %v1568, %v1371
    %1572 = vrot.lane.b32.xlu0 %v1569, 64
    %v1573 = vpop.permute.xlu0 %1572
    %v1575 = vmul.f32 %v1568, %v1573
    %1577 = vrot.lane.b32.xlu0 %v1575, 32
    %v1578 = vpop.permute.xlu0 %1577
    %v1580 = vadd.f32 %v1570, %v1578
    %v1581 = vtanh.pop %v1580
    %1583 = vrot.lane.b32.xlu0 %v1581, 64
    %v1584 = vpop.permute.xlu0 %1583
    %v1586 = vmul.f32 %v1568, %v1584
    %s1587 = scalar_lea.vmem [#allocation2], 56
    %v1588 = vld [vmem:[%s1587] sm:$0xff]
    %1589 = vrot.lane.b32.xlu0 %v1480, 48
    %v1590 = vpop.permute.xlu0 %1589
    %v1592 = vsel %vm105, %v1588, %v1590
    %v1594 = vsel %vm113, %v1592, 0
    %1596 = vmatprep.subr.mxu0 0.0
    %1597 = vmatpush1.msra.mxu0 0.0
    %1598 = vmatprep.subr.mxu0 0.0
    %1599 = vmatpush1.msra.mxu0 0.0
    %1600 = vmatprep.subr.mxu0 0.0
    %1601 = vmatpush1.msra.mxu0 0.0
    %1602 = vmatprep.subr.mxu0 0.0
    %1603 = vmatpush1.msra.mxu0 0.0
    %1604 = vmatprep.subr.mxu0 0.0
    %1605 = vmatpush1.msra.mxu0 0.0
    %1606 = vmatprep.subr.mxu0 0.0
    %1607 = vmatpush1.msra.mxu0 0.0
    %1608 = vmatprep.subr.mxu0 0.0
    %1609 = vmatpush1.msra.mxu0 0.0
    %1610 = vmatprep.subr.mxu0 0.0
    %1611 = vmatpush1.msra.mxu0 0.0
    %1612 = vmatprep.subr.mxu0 0.0
    %1613 = vmatpush1.msra.mxu0 0.0
    %1614 = vmatprep.subr.mxu0 0.0
    %1615 = vmatpush1.msra.mxu0 0.0
    %1616 = vmatprep.subr.mxu0 0.0
    %1617 = vmatpush1.msra.mxu0 %v83
    %1618 = vmatprep.subr.mxu0 0.0
    %1619 = vmatpush1.msra.mxu0 %v82
    %1620 = vmatprep.subr.mxu0 0.0
    %1621 = vmatpush1.msra.mxu0 %v81
    %1622 = vmatprep.subr.mxu0 0.0
    %1623 = vmatpush1.msra.mxu0 %v80
    %1624 = vmatprep.subr.mxu0 0.0
    %1625 = vmatpush1.msra.mxu0 %v79
    %1626 = vmatprep.subr.mxu0 0.0
    %1627 = vmatpush1.msra.mxu0 %v78
    %1628 = vmatprep.subr.mxu0 0.0
    %1629 = vmatpush2.msra.mxu0 0.0
    %1630 = vmatprep.subr.mxu0 0.0
    %1631 = vmatpush2.msra.mxu0 0.0
    %1632 = vmatprep.subr.mxu0 0.0
    %1633 = vmatpush2.msra.mxu0 0.0
    %1634 = vmatprep.subr.mxu0 0.0
    %1635 = vmatpush2.msra.mxu0 0.0
    %1636 = vmatprep.subr.mxu0 0.0
    %1637 = vmatpush2.msra.mxu0 0.0
    %1638 = vmatprep.subr.mxu0 0.0
    %1639 = vmatpush2.msra.mxu0 0.0
    %1640 = vmatprep.subr.mxu0 0.0
    %1641 = vmatpush2.msra.mxu0 0.0
    %1642 = vmatprep.subr.mxu0 0.0
    %1643 = vmatpush2.msra.mxu0 0.0
    %1644 = vmatprep.subr.mxu0 0.0
    %1645 = vmatpush2.msra.mxu0 0.0
    %1646 = vmatprep.subr.mxu0 0.0
    %1647 = vmatpush2.msra.mxu0 0.0
    %1648 = vmatprep.subr.mxu0 0.0
    %1649 = vmatpush2.msra.mxu0 0.0
    %1650 = vmatprep.subr.mxu0 0.0
    %1651 = vmatpush2.msra.mxu0 0.0
    %1652 = vmatprep.subr.mxu0 0.0
    %1653 = vmatpush2.msra.mxu0 0.0
    %1654 = vmatprep.subr.mxu0 0.0
    %1655 = vmatpush2.msra.mxu0 0.0
    %1656 = vmatprep.subr.mxu0 0.0
    %1657 = vmatpush2.msra.mxu0 0.0
    %1658 = vmatprep.subr.mxu0 0.0
    %1659 = vmatpush2.msra.mxu0 0.0
    %1660 = vmatprep.mubr.f32.mxu0 0.0
    %1661 = vmatmul.mubr.f32.gmra.mxu0 %v1594
    %v1662 = vpop.f32.mrf.mxu0
    %v1663 = vadd.f32 %v111, %v1662
    %v1664 = vpop.f32.mrf.mxu0
    %1665 = vdwg.mxu0
    %v1666 = vxor.u32 %v1663, 2147483648
    %v1667 = vmul.f32 %v1666, 1.442695
    %v1668 = vpow.pop %v1667
    %v1669 = vadd.f32 %v1668, 1.0
    %v1670 = vrcp.pop %v1669
    %v1671 = vmul.f32 1.0, %v1670
    %v1672 = vtanh.pop %v1663
    %v1673 = vmul.f32 %v1671, %v1474
    %1675 = vrot.lane.b32.xlu0 %v1672, 64
    %v1676 = vpop.permute.xlu0 %1675
    %v1678 = vmul.f32 %v1671, %v1676
    %1680 = vrot.lane.b32.xlu0 %v1678, 32
    %v1681 = vpop.permute.xlu0 %1680
    %v1683 = vadd.f32 %v1673, %v1681
    %v1684 = vtanh.pop %v1683
    %1686 = vrot.lane.b32.xlu0 %v1684, 64
    %v1687 = vpop.permute.xlu0 %1686
    %v1689 = vmul.f32 %v1671, %v1687
    %1691 = vrot.lane.b32.xlu0 %v1689, 32
    %v1692 = vpop.permute.xlu0 %1691
    %1695 = vrot.lane.b32.xlu0 %v1586, 64
    %v1696 = vpop.permute.xlu0 %1695
    %v1698 = vsel %vm223, %v1692, %v1696
    %v1700 = vsel %vm231, %v1698, 0
    %1702 = vmatprep.subr.mxu0 0.0
    %1703 = vmatpush1.msra.mxu0 0.0
    %1704 = vmatprep.subr.mxu0 0.0
    %1705 = vmatpush1.msra.mxu0 0.0
    %1706 = vmatprep.subr.mxu0 0.0
    %1707 = vmatpush1.msra.mxu0 0.0
    %1708 = vmatprep.subr.mxu0 0.0
    %1709 = vmatpush1.msra.mxu0 0.0
    %1710 = vmatprep.subr.mxu0 0.0
    %1711 = vmatpush1.msra.mxu0 0.0
    %1712 = vmatprep.subr.mxu0 0.0
    %1713 = vmatpush1.msra.mxu0 0.0
    %1714 = vmatprep.subr.mxu0 0.0
    %1715 = vmatpush1.msra.mxu0 0.0
    %1716 = vmatprep.subr.mxu0 0.0
    %1717 = vmatpush1.msra.mxu0 0.0
    %1718 = vmatprep.subr.mxu0 0.0
    %1719 = vmatpush1.msra.mxu0 %v91
    %1720 = vmatprep.subr.mxu0 0.0
    %1721 = vmatpush1.msra.mxu0 %v90
    %1722 = vmatprep.subr.mxu0 0.0
    %1723 = vmatpush1.msra.mxu0 %v89
    %1724 = vmatprep.subr.mxu0 0.0
    %1725 = vmatpush1.msra.mxu0 %v88
    %1726 = vmatprep.subr.mxu0 0.0
    %1727 = vmatpush1.msra.mxu0 %v87
    %1728 = vmatprep.subr.mxu0 0.0
    %1729 = vmatpush1.msra.mxu0 %v86
    %1730 = vmatprep.subr.mxu0 0.0
    %1731 = vmatpush1.msra.mxu0 %v85
    %1732 = vmatprep.subr.mxu0 0.0
    %1733 = vmatpush1.msra.mxu0 %v84
    %1734 = vmatprep.subr.mxu0 0.0
    %1735 = vmatpush2.msra.mxu0 0.0
    %1736 = vmatprep.subr.mxu0 0.0
    %1737 = vmatpush2.msra.mxu0 0.0
    %1738 = vmatprep.subr.mxu0 0.0
    %1739 = vmatpush2.msra.mxu0 0.0
    %1740 = vmatprep.subr.mxu0 0.0
    %1741 = vmatpush2.msra.mxu0 0.0
    %1742 = vmatprep.subr.mxu0 0.0
    %1743 = vmatpush2.msra.mxu0 0.0
    %1744 = vmatprep.subr.mxu0 0.0
    %1745 = vmatpush2.msra.mxu0 0.0
    %1746 = vmatprep.subr.mxu0 0.0
    %1747 = vmatpush2.msra.mxu0 0.0
    %1748 = vmatprep.subr.mxu0 0.0
    %1749 = vmatpush2.msra.mxu0 0.0
    %1750 = vmatprep.subr.mxu0 0.0
    %1751 = vmatpush2.msra.mxu0 0.0
    %1752 = vmatprep.subr.mxu0 0.0
    %1753 = vmatpush2.msra.mxu0 0.0
    %1754 = vmatprep.subr.mxu0 0.0
    %1755 = vmatpush2.msra.mxu0 0.0
    %1756 = vmatprep.subr.mxu0 0.0
    %1757 = vmatpush2.msra.mxu0 0.0
    %1758 = vmatprep.subr.mxu0 0.0
    %1759 = vmatpush2.msra.mxu0 0.0
    %1760 = vmatprep.subr.mxu0 0.0
    %1761 = vmatpush2.msra.mxu0 0.0
    %1762 = vmatprep.subr.mxu0 0.0
    %1763 = vmatpush2.msra.mxu0 0.0
    %1764 = vmatprep.subr.mxu0 0.0
    %1765 = vmatpush2.msra.mxu0 0.0
    %1766 = vmatprep.mubr.f32.mxu0 0.0
    %1767 = vmatmul.mubr.f32.gmra.mxu0 %v1700
    %v1768 = vpop.f32.mrf.mxu0
    %v1769 = vadd.f32 %v229, %v1768
    %v1770 = vpop.f32.mrf.mxu0
    %1771 = vdwg.mxu0
    %v1772 = vxor.u32 %v1769, 2147483648
    %v1773 = vmul.f32 %v1772, 1.442695
    %v1774 = vpow.pop %v1773
    %v1775 = vadd.f32 %v1774, 1.0
    %v1776 = vrcp.pop %v1775
    %v1777 = vmul.f32 1.0, %v1776
    %v1778 = vtanh.pop %v1769
    %v1779 = vmul.f32 %v1777, %v1580
    %1781 = vrot.lane.b32.xlu0 %v1778, 64
    %v1782 = vpop.permute.xlu0 %1781
    %v1784 = vmul.f32 %v1777, %v1782
    %1786 = vrot.lane.b32.xlu0 %v1784, 32
    %v1787 = vpop.permute.xlu0 %1786
    %v1789 = vadd.f32 %v1779, %v1787
    %v1790 = vtanh.pop %v1789
    %1792 = vrot.lane.b32.xlu0 %v1790, 64
    %v1793 = vpop.permute.xlu0 %1792
    %v1795 = vmul.f32 %v1777, %v1793
    %v1796 = vld [vmem:[%s7] sm:$0xff]
    %v1797 = vld [vmem:[%s7 + $0x8] sm:$0xff]
    %v1798 = vld [vmem:[%s7 + $0x10] sm:$0xff]
    %v1799 = vld [vmem:[%s7 + $0x18] sm:$0xff]
    %v1800 = vld [vmem:[%s8] sm:$0x1]
    %v1802 = vlaneseq
    %v1803 = vshrl.u32 %v1802, 7
    %v1804 = vsub.s32 0, %v1803
    %v1805 = vrot.slane %v1800, %v1804
    %1808 = vrot.lane.b32.xlu0 %v1795, 32
    %v1809 = vpop.permute.xlu0 %1808
    %v1810 = vsel %vm223, %v1809, 0
    %1812 = vmatprep.subr.mxu0 0.0
    %1813 = vmatpush1.msra.mxu0 0.0
    %1814 = vmatprep.subr.mxu0 0.0
    %1815 = vmatpush1.msra.mxu0 0.0
    %1816 = vmatprep.subr.mxu0 0.0
    %1817 = vmatpush1.msra.mxu0 0.0
    %1818 = vmatprep.subr.mxu0 0.0
    %1819 = vmatpush1.msra.mxu0 0.0
    %1820 = vmatprep.subr.mxu0 0.0
    %1821 = vmatpush1.msra.mxu0 0.0
    %1822 = vmatprep.subr.mxu0 0.0
    %1823 = vmatpush1.msra.mxu0 0.0
    %1824 = vmatprep.subr.mxu0 0.0
    %1825 = vmatpush1.msra.mxu0 0.0
    %1826 = vmatprep.subr.mxu0 0.0
    %1827 = vmatpush1.msra.mxu0 0.0
    %1828 = vmatprep.subr.mxu0 0.0
    %1829 = vmatpush1.msra.mxu0 0.0
    %1830 = vmatprep.subr.mxu0 0.0
    %1831 = vmatpush1.msra.mxu0 0.0
    %1832 = vmatprep.subr.mxu0 0.0
    %1833 = vmatpush1.msra.mxu0 0.0
    %1834 = vmatprep.subr.mxu0 0.0
    %1835 = vmatpush1.msra.mxu0 0.0
    %1836 = vmatprep.subr.mxu0 0.0
    %1837 = vmatpush1.msra.mxu0 %v1799
    %1838 = vmatprep.subr.mxu0 0.0
    %1839 = vmatpush1.msra.mxu0 %v1798
    %1840 = vmatprep.subr.mxu0 0.0
    %1841 = vmatpush1.msra.mxu0 %v1797
    %1842 = vmatprep.subr.mxu0 0.0
    %1843 = vmatpush1.msra.mxu0 %v1796
    %1844 = vmatprep.subr.mxu0 0.0
    %1845 = vmatpush2.msra.mxu0 0.0
    %1846 = vmatprep.subr.mxu0 0.0
    %1847 = vmatpush2.msra.mxu0 0.0
    %1848 = vmatprep.subr.mxu0 0.0
    %1849 = vmatpush2.msra.mxu0 0.0
    %1850 = vmatprep.subr.mxu0 0.0
    %1851 = vmatpush2.msra.mxu0 0.0
    %1852 = vmatprep.subr.mxu0 0.0
    %1853 = vmatpush2.msra.mxu0 0.0
    %1854 = vmatprep.subr.mxu0 0.0
    %1855 = vmatpush2.msra.mxu0 0.0
    %1856 = vmatprep.subr.mxu0 0.0
    %1857 = vmatpush2.msra.mxu0 0.0
    %1858 = vmatprep.subr.mxu0 0.0
    %1859 = vmatpush2.msra.mxu0 0.0
    %1860 = vmatprep.subr.mxu0 0.0
    %1861 = vmatpush2.msra.mxu0 0.0
    %1862 = vmatprep.subr.mxu0 0.0
    %1863 = vmatpush2.msra.mxu0 0.0
    %1864 = vmatprep.subr.mxu0 0.0
    %1865 = vmatpush2.msra.mxu0 0.0
    %1866 = vmatprep.subr.mxu0 0.0
    %1867 = vmatpush2.msra.mxu0 0.0
    %1868 = vmatprep.subr.mxu0 0.0
    %1869 = vmatpush2.msra.mxu0 0.0
    %1870 = vmatprep.subr.mxu0 0.0
    %1871 = vmatpush2.msra.mxu0 0.0
    %1872 = vmatprep.subr.mxu0 0.0
    %1873 = vmatpush2.msra.mxu0 0.0
    %1874 = vmatprep.subr.mxu0 0.0
    %1875 = vmatpush2.msra.mxu0 0.0
    %1876 = vmatprep.mubr.f32.mxu0 0.0
    %1877 = vmatmul.mubr.f32.gmra.mxu0 %v1810
    %v1878 = vpop.f32.mrf.mxu0
    %v1879 = vadd.f32 %v1805, %v1878
    %v1880 = vpop.f32.mrf.mxu0
    %1881 = vdwg.mxu0
    %v1882 = vxor.u32 %v1879, 2147483648
    %v1883 = vmul.f32 %v1882, 1.442695
    %v1884 = vpow.pop %v1883
    %v1885 = vadd.f32 %v1884, 1.0
    %v1886 = vrcp.pop %v1885
    %v1887 = vmul.f32 1.0, %v1886
    %vm1888 = vcmask 15360
    %1889 = vst.msk [vmem:[%s9] sm:$0xff] %vm1888, %v1887
    %1890 = vst.msk [vmem:[#allocation8] sm:$0xff] %vm223, %v1692
    %1892 = vrot.lane.b32.xlu0 %v1683, 96
    %v1893 = vpop.permute.xlu0 %1892
    %1895 = vst.msk [vmem:[#allocation9] sm:$0xff] %vm223, %v1893
    %s1897 = scalar_lea.vmem [#allocation8], 8
    %1898 = vst.msk [vmem:[%s1897] sm:$0xff] %vm223, %v1809
    %1900 = vrot.lane.b32.xlu0 %v1789, 96
    %v1901 = vpop.permute.xlu0 %1900
    %s1903 = scalar_lea.vmem [#allocation9], 8
    %1904 = vst.msk [vmem:[%s1903] sm:$0xff] %vm223, %v1901
    // Predicated region
    $region50: #{tpu_custom_call.1} parent=1 // pred_check
      _
    $region51: #{tpu_custom_call.1} parent=1 // pred_check_branch
      %1906 = sbr.rel (0) target = $region53
    $region52: #{tpu_custom_call.1} parent=1 // pred_region
      _
    $region53: #{tpu_custom_call.1} parent=1 // pred_fallthru
      _
    // Predicated region
    $region54: #{tpu_custom_call.1} parent=1 // pred_check
      _
    $region55: #{tpu_custom_call.1} parent=1 // pred_check_branch
      %1908 = sbr.rel (0) target = $region57
    $region56: #{tpu_custom_call.1} parent=1 // pred_region
      %s1910 = ssub.s32 256, 256
      %1911 = vsyncadd [#allocation4], %s1910
      %s1912 = sshll.u32 [#allocation8], 4
      %s1913 = int_to_ptr.vmem [resolvable:$true] %s1912
      %1918 = dma.vmem_to_hbm [thread:$0]  %s1913, 256, %s10, [#allocation4], 128, 128, 8
    $region57: #{tpu_custom_call.1} parent=1 // pred_fallthru
      _
    // Predicated region
    $region58: #{tpu_custom_call.1} parent=1 // pred_check
      _
    $region59: #{tpu_custom_call.1} parent=1 // pred_check_branch
      %1920 = sbr.rel (0) target = $region61
    $region60: #{tpu_custom_call.1} parent=1 // pred_region
      %s1922 = ssub.s32 256, 256
      %1923 = vsyncadd [#allocation10], %s1922
      %s1924 = sshll.u32 [#allocation9], 4
      %s1925 = int_to_ptr.vmem [resolvable:$true] %s1924
      %1930 = dma.vmem_to_hbm [thread:$0]  %s1925, 256, %s11, [#allocation10], 128, 128, 8
    $region61: #{tpu_custom_call.1} parent=1 // pred_fallthru
      _
    // Predicated region
    $region62: #{tpu_custom_call.1} parent=1 // pred_check
      _
    $region63: #{tpu_custom_call.1} parent=1 // pred_check_branch
      %1932 = sbr.rel (0) target = $region65
    $region64: #{tpu_custom_call.1} parent=1 // pred_region
      _
    $region65: #{tpu_custom_call.1} parent=1 // pred_fallthru
      _
    // Predicated region
    $region66: #{tpu_custom_call.1} parent=1 // pred_check
      _
    $region67: #{tpu_custom_call.1} parent=1 // pred_check_branch
      %1934 = sbr.rel (0) target = $region69
    $region68: #{tpu_custom_call.1} parent=1 // pred_region
      %1935 = dma.done [#allocation4], 256
    $region69: #{tpu_custom_call.1} parent=1 // pred_fallthru
      _
    // Predicated region
    $region70: #{tpu_custom_call.1} parent=1 // pred_check
      _
    $region71: #{tpu_custom_call.1} parent=1 // pred_check_branch
      %1937 = sbr.rel (0) target = $region73
    $region72: #{tpu_custom_call.1} parent=1 // pred_region
      %1938 = dma.done [#allocation10], 256
    $region73: #{tpu_custom_call.1} parent=1 // pred_fallthru
      _
    %1939 = vsyncpa [#allocation3], 1
    %1940 = vsyncpa [#allocation6], 1
    %1941 = vsyncpa [#allocation4], 1
    %1942 = vsyncpa [#allocation10], 1

</llo_original>
